<compile_context>
chip_gen: v6e
topology: v6e:2x2x1
jax: 0.10.0
libtpu: 0.0.40
codegen_flags: <defaults>
</compile_context>

<pallas_src>
import jax
import jax.numpy as jnp
from jax import lax
from jax.experimental import pallas as pl
from jax.experimental.pallas import tpu as pltpu


def _nonlocal_kernel(x_ref,                 # (1, C, TN)  f32   streamed token tile
                     phi_ref,               # (1, Np, Ci) bf16  per-batch resident
                     g_ref,                 # (1, Ci, Np) bf16  per-batch resident
                     wt_ref, bt_ref,        # theta 1x1 conv: (Ci, C) bf16, (Ci, 1) f32 (scale folded in)
                     wo_ref, bo_ref,        # out   1x1 conv: (Cout, Ci) bf16, (Cout, 1) f32
                     o_ref):                # (1, Cout, TN) f32
    # theta (channel-major): (Ci, C) @ (C, TN) -> (Ci, TN); scale is folded into wt/bt.
    xb = x_ref[0].astype(jnp.bfloat16)
    theta = lax.dot_general(wt_ref[...], xb, (((1,), (0,)), ((), ())),
                            preferred_element_type=jnp.float32) + bt_ref[...]

    # scores: (Np, Ci) @ (Ci, TN) -> (Np, TN)
    s = lax.dot_general(phi_ref[0], theta.astype(jnp.bfloat16),
                        (((1,), (0,)), ((), ())),
                        preferred_element_type=jnp.float32)

    # softmax over the Np axis (dim 0), normalization deferred past the Np matmul.
    m = jnp.max(s, axis=0, keepdims=True)               # (1, TN)
    e = jnp.exp(s - m)                                   # (Np, TN)
    denom = jnp.sum(e, axis=0, keepdims=True)            # (1, TN)

    # t = g @ softmax_weights : (Ci, Np) @ (Np, TN) -> (Ci, TN)
    t = lax.dot_general(g_ref[0], e.astype(jnp.bfloat16),
                        (((1,), (0,)), ((), ())),
                        preferred_element_type=jnp.float32)
    t = t * pl.reciprocal(denom, approx=False)            # exact deferred softmax norm

    # output 1x1 conv: (Cout, Ci) @ (Ci, TN) -> (Cout, TN), then f32 residual.
    y = lax.dot_general(wo_ref[...], t.astype(jnp.bfloat16),
                        (((1,), (0,)), ((), ())),
                        preferred_element_type=jnp.float32) + bo_ref[...]
    o_ref[0] = (y + x_ref[0]).astype(o_ref.dtype)


def nonlocal2d_pallas(x, params, dim_inner, use_scale=True, use_maxpool=True):
    """x: (B, C, H, W) float32 NCHW like PyTorch. Returns (B, C, H, W) float32."""
    B, C, H, W = x.shape
    N = H * W

    wt, bt, wp, bp, wg, bg, wo, bo = params   # conv weights in (out, in) layout
    Ci = wt.shape[0]
    Cout = wo.shape[0]
    assert Cout == C, "residual y + x requires dim_out == dim_in"

    # --- pooled path (kernel=stride=2 max pool, padding=0 -> floor like PyTorch) ---
    if use_maxpool:
        Hp, Wp = H // 2, W // 2
        xp = x[:, :, :Hp * 2, :Wp * 2].reshape(B, C, Hp, 2, Wp, 2).max(axis=(3, 5))
    else:
        xp = x
        Hp, Wp = H, W
    Np = Hp * Wp
    xp_f = xp.reshape(B, C, Np)                                          # (B, C, Np) f32

    # Fold the attention scale into the theta weights/bias on the host (free).
    scale = dim_inner ** (-0.5) if use_scale else 1.0
    wt_b = (wt * scale).astype(jnp.bfloat16)
    bt_c = (bt * scale).reshape(Ci, 1)                                   # f32
    wo_b = wo.astype(jnp.bfloat16)
    bo_c = bo.reshape(Cout, 1)                                           # f32

    # Hoisted pooled-path projections (tiny matmuls; fuse with pool + cast in XLA):
    #   phi token-major (B, Np, Ci), g channel-major (B, Ci, Np), both bf16 MXU operands.
    phi_b = (jnp.einsum('ic,bcn->bni', wp, xp_f) + bp[None, None, :]).astype(jnp.bfloat16)
    g_b = (jnp.einsum('ic,bcn->bin', wg, xp_f) + bg[None, :, None]).astype(jnp.bfloat16)

    # --- generation-aware VMEM budget ---
    try:
        vmem_cap = int(pltpu.get_tpu_info().vmem_capacity_bytes)
    except Exception:
        vmem_cap = 64 * 1024 * 1024          # conservative fallback (safe on all gens)
    vmem_limit = min(vmem_cap * 3 // 4, 96 * 1024 * 1024)   # ~96 MiB v5e/v6e, ~48 MiB v7x

    # --- token-axis tile: prefer 512 (256 on VMEM-tight v7x at large shapes); pad N ---
    if N <= 512:
        TN = N
    else:
        TN = 512
        if vmem_cap <= 64 * 1024 * 1024 and (Np * C >= (1 << 20) or Np * TN * 4 > (8 << 20)):
            TN = 256
    # TODO(synk): for use_maxpool=False with very large Np, a flash-style online softmax
    # over Np inside the kernel would be needed to keep the (Np, TN) score block in VMEM.
    N_pad = pl.cdiv(N, TN) * TN
    n_tiles = N_pad // TN

    # Big tensor stays channel-first (pure reshape, no transpose); pad padded tokens
    # with zeros (no masking needed: softmax is over Np, and padded output is sliced).
    x_cf = x.reshape(B, C, N)
    if N_pad != N:
        x_cf = jnp.pad(x_cf, ((0, 0), (0, 0), (0, N_pad - N)))

    # Single-buffer constants (weights/biases) — they never change mid-grid.
    const_spec = lambda a: pl.BlockSpec(a.shape, lambda b, n: (0,) * a.ndim,
                                        pipeline_mode=pl.Buffered(1))

    out_cf = pl.pallas_call(
        _nonlocal_kernel,
        out_shape=jax.ShapeDtypeStruct((B, Cout, N_pad), x.dtype),
        grid_spec=pltpu.PrefetchScalarGridSpec(
            num_scalar_prefetch=0,
            grid=(B, n_tiles),
            in_specs=[
                pl.BlockSpec((1, C, TN), lambda b, n: (b, 0, n)),        # streamed x tile
                pl.BlockSpec((1, Np, Ci), lambda b, n: (b, 0, 0),
                             pipeline_mode=pl.Buffered(1)),              # phi, per-batch resident
                pl.BlockSpec((1, Ci, Np), lambda b, n: (b, 0, 0),
                             pipeline_mode=pl.Buffered(1)),              # g, per-batch resident
                const_spec(wt_b), const_spec(bt_c),
                const_spec(wo_b), const_spec(bo_c),
            ],
            out_specs=pl.BlockSpec((1, Cout, TN), lambda b, n: (b, 0, n)),
        ),
        compiler_params=pltpu.CompilerParams(
            # No cross-tile state anymore -> both axes parallel (v7x dual-TC sharding).
            dimension_semantics=("parallel", "parallel"),
            vmem_limit_bytes=int(vmem_limit)),
    )(x_cf, phi_b, g_b, wt_b, bt_c, wo_b, bo_c)

    if N_pad != N:
        out_cf = out_cf[:, :, :N]
    return out_cf.reshape(B, Cout, H, W)


def init_params(key, dim_in, dim_inner, dim_out):
    """Matches nn.init.normal_(std=0.01) on conv weights, zero biases.
    1x1 conv weight (out, in, 1, 1) is stored as an (out, in) matrix."""
    k = jax.random.split(key, 4)
    wt = 0.01 * jax.random.normal(k[0], (dim_inner, dim_in), jnp.float32)
    wp = 0.01 * jax.random.normal(k[1], (dim_inner, dim_in), jnp.float32)
    wg = 0.01 * jax.random.normal(k[2], (dim_inner, dim_in), jnp.float32)
    wo = 0.01 * jax.random.normal(k[3], (dim_out, dim_inner), jnp.float32)
    bt = jnp.zeros((dim_inner,), jnp.float32)
    bp = jnp.zeros((dim_inner,), jnp.float32)
    bg = jnp.zeros((dim_inner,), jnp.float32)
    bo = jnp.zeros((dim_out,), jnp.float32)
    return (wt, bt, wp, bp, wg, bg, wo, bo)


def nonlocal2d_ref(x, params, dim_inner, use_scale=True, use_maxpool=True):
    """Pure-JAX f32 reference mirroring the PyTorch forward (for verification)."""
    wt, bt, wp, bp, wg, bg, wo, bo = params
    B, C, H, W = x.shape
    N = H * W
    if use_maxpool:
        Hp, Wp = H // 2, W // 2
        xp = x[:, :, :Hp * 2, :Wp * 2].reshape(B, C, Hp, 2, Wp, 2).max(axis=(3, 5))
    else:
        xp = x
    Np = xp.shape[2] * xp.shape[3]
    xf = x.reshape(B, C, N).transpose(0, 2, 1)        # (B, N, C)
    xpf = xp.reshape(B, C, Np).transpose(0, 2, 1)     # (B, Np, C)
    theta = xf @ wt.T + bt
    phi = xpf @ wp.T + bp
    g = xpf @ wg.T + bg
    s = jnp.einsum('bnc,bmc->bnm', theta, phi)
    if use_scale:
        s = s * dim_inner ** (-0.5)
    p = jax.nn.softmax(s, axis=-1)
    t = jnp.einsum('bnm,bmc->bnc', p, g)
    y = t @ wo.T + bo
    out = y + xf
    return out.transpose(0, 2, 1).reshape(B, C, H, W)


if __name__ == "__main__":
    # Module defaults: use_maxpool=True, use_gn=False, use_scale=True.
    # TODO(synk): GroupNorm branch (use_gn=True) not implemented; defaults disable it.
    # N = 24*28 = 672 (> 512, not a multiple of 128) exercises the pad-to-TN path
    # with 2 token tiles of TN=512.
    B, C, H, W = 2, 8, 24, 28
    dim_in, dim_inner, dim_out = C, 4, C   # dim_out == dim_in required by the residual

    key = jax.random.PRNGKey(0)
    kx, kp = jax.random.split(key)
    x = jax.random.normal(kx, (B, C, H, W), jnp.float32)
    params = init_params(kp, dim_in, dim_inner, dim_out)

    fwd = jax.jit(lambda xx, pp: nonlocal2d_pallas(xx, pp, dim_inner))
    out = jax.block_until_ready(fwd(x, params))

    ref = nonlocal2d_ref(x, params, dim_inner)
    assert out.shape == (B, C, H, W)
    err = float(jnp.max(jnp.abs(out - ref)))
    # bf16 MXU operands (f32 accumulation, f32 residual) -> loosened tolerance vs f32 ref.
    assert jnp.allclose(out, ref, atol=2e-3, rtol=2e-3), f"mismatch vs reference (max abs err {err})"

    print("KERNEL_OK")
</pallas_src>

<mosaic_0001>
module attributes {stable_mosaic.version = 11 : i64} {
  func.func @_nonlocal_kernel(%arg0: i32, %arg1: i32, %arg2: memref<1x8x512xf32, #tpu.memory_space<vmem>>, %arg3: memref<1x168x4xbf16, #tpu.memory_space<vmem>>, %arg4: memref<1x4x168xbf16, #tpu.memory_space<vmem>>, %arg5: memref<4x8xbf16, #tpu.memory_space<vmem>>, %arg6: memref<4x1xf32, #tpu.memory_space<vmem>>, %arg7: memref<8x4xbf16, #tpu.memory_space<vmem>>, %arg8: memref<8x1xf32, #tpu.memory_space<vmem>>, %arg9: memref<1x8x512xf32, #tpu.memory_space<vmem>>) attributes {dimension_semantics = [#tpu.dimension_semantics<parallel>, #tpu.dimension_semantics<parallel>], iteration_bounds = array<i64: 2, 2>, scalar_prefetch = 0 : i64, scratch_operands = 0 : i64, tpu.core_type = #tpu.core_type<tc>, window_params = [{transform_indices = @transform_0, window_bounds = array<i64: 1, 8, 512>}, {pipeline_mode = #tpu.pipeline_mode<synchronous>, transform_indices = @transform_1, window_bounds = array<i64: 1, 168, 4>}, {pipeline_mode = #tpu.pipeline_mode<synchronous>, transform_indices = @transform_2, window_bounds = array<i64: 1, 4, 168>}, {pipeline_mode = #tpu.pipeline_mode<synchronous>, transform_indices = @transform_3, window_bounds = array<i64: 4, 8>}, {pipeline_mode = #tpu.pipeline_mode<synchronous>, transform_indices = @transform_4, window_bounds = array<i64: 4, 1>}, {pipeline_mode = #tpu.pipeline_mode<synchronous>, transform_indices = @transform_5, window_bounds = array<i64: 8, 4>}, {pipeline_mode = #tpu.pipeline_mode<synchronous>, transform_indices = @transform_6, window_bounds = array<i64: 8, 1>}, {transform_indices = @transform_7, window_bounds = array<i64: 1, 8, 512>}]} {
    %c0 = arith.constant 0 : index
    %c0_0 = arith.constant 0 : index
    %c0_1 = arith.constant 0 : index
    %0 = vector.load %arg2[%c0, %c0_0, %c0_1] : memref<1x8x512xf32, #tpu.memory_space<vmem>>, vector<1x8x512xf32>
    %1 = vector.shape_cast %0 : vector<1x8x512xf32> to vector<8x512xf32>
    %2 = arith.truncf %1 : vector<8x512xf32> to vector<8x512xbf16>
    %c0_2 = arith.constant 0 : index
    %c0_3 = arith.constant 0 : index
    %3 = vector.load %arg5[%c0_2, %c0_3] : memref<4x8xbf16, #tpu.memory_space<vmem>>, vector<4x8xbf16>
    %cst = arith.constant dense<0.000000e+00> : vector<4x512xf32>
    %4 = tpu.matmul %3, %2, %cst {dimension_numbers = #tpu.dot_dimension_numbers<[1], [0], [0], [1], [0, 0, 1, 1], [], []>} : vector<4x8xbf16>, vector<8x512xbf16>, vector<4x512xf32> -> vector<4x512xf32>
    %c0_4 = arith.constant 0 : index
    %c0_5 = arith.constant 0 : index
    %5 = vector.load %arg6[%c0_4, %c0_5] : memref<4x1xf32, #tpu.memory_space<vmem>>, vector<4x1xf32>
    %6 = vector.broadcast %5 : vector<4x1xf32> to vector<4x512xf32>
    %7 = arith.addf %4, %6 : vector<4x512xf32>
    %c0_6 = arith.constant 0 : index
    %c0_7 = arith.constant 0 : index
    %c0_8 = arith.constant 0 : index
    %8 = vector.load %arg3[%c0_6, %c0_7, %c0_8] : memref<1x168x4xbf16, #tpu.memory_space<vmem>>, vector<1x168x4xbf16>
    %9 = vector.shape_cast %8 : vector<1x168x4xbf16> to vector<168x4xbf16>
    %10 = arith.truncf %7 : vector<4x512xf32> to vector<4x512xbf16>
    %cst_9 = arith.constant dense<0.000000e+00> : vector<168x512xf32>
    %11 = tpu.matmul %9, %10, %cst_9 {dimension_numbers = #tpu.dot_dimension_numbers<[1], [0], [0], [1], [0, 0, 1, 1], [], []>} : vector<168x4xbf16>, vector<4x512xbf16>, vector<168x512xf32> -> vector<168x512xf32>
    %cst_10 = arith.constant dense<0xFF800000> : vector<512xf32>
    %12 = vector.multi_reduction <maximumf>, %11, %cst_10 [0] : vector<168x512xf32> to vector<512xf32>
    %13 = vector.shape_cast %12 : vector<512xf32> to vector<1x512xf32>
    %14 = vector.broadcast %13 : vector<1x512xf32> to vector<168x512xf32>
    %15 = arith.subf %11, %14 : vector<168x512xf32>
    %16 = math.exp %15 : vector<168x512xf32>
    %cst_11 = arith.constant dense<0.000000e+00> : vector<512xf32>
    %17 = vector.multi_reduction <add>, %16, %cst_11 [0] : vector<168x512xf32> to vector<512xf32>
    %18 = vector.shape_cast %17 : vector<512xf32> to vector<1x512xf32>
    %c0_12 = arith.constant 0 : index
    %c0_13 = arith.constant 0 : index
    %c0_14 = arith.constant 0 : index
    %19 = vector.load %arg4[%c0_12, %c0_13, %c0_14] : memref<1x4x168xbf16, #tpu.memory_space<vmem>>, vector<1x4x168xbf16>
    %20 = vector.shape_cast %19 : vector<1x4x168xbf16> to vector<4x168xbf16>
    %21 = arith.truncf %16 : vector<168x512xf32> to vector<168x512xbf16>
    %cst_15 = arith.constant dense<0.000000e+00> : vector<4x512xf32>
    %22 = tpu.matmul %20, %21, %cst_15 {dimension_numbers = #tpu.dot_dimension_numbers<[1], [0], [0], [1], [0, 0, 1, 1], [], []>} : vector<4x168xbf16>, vector<168x512xbf16>, vector<4x512xf32> -> vector<4x512xf32>
    %23 = tpu.reciprocal %18 : vector<1x512xf32> -> vector<1x512xf32>
    %24 = vector.broadcast %23 : vector<1x512xf32> to vector<4x512xf32>
    %25 = arith.mulf %22, %24 : vector<4x512xf32>
    %c0_16 = arith.constant 0 : index
    %c0_17 = arith.constant 0 : index
    %26 = vector.load %arg7[%c0_16, %c0_17] : memref<8x4xbf16, #tpu.memory_space<vmem>>, vector<8x4xbf16>
    %27 = arith.truncf %25 : vector<4x512xf32> to vector<4x512xbf16>
    %cst_18 = arith.constant dense<0.000000e+00> : vector<8x512xf32>
    %28 = tpu.matmul %26, %27, %cst_18 {dimension_numbers = #tpu.dot_dimension_numbers<[1], [0], [0], [1], [0, 0, 1, 1], [], []>} : vector<8x4xbf16>, vector<4x512xbf16>, vector<8x512xf32> -> vector<8x512xf32>
    %c0_19 = arith.constant 0 : index
    %c0_20 = arith.constant 0 : index
    %29 = vector.load %arg8[%c0_19, %c0_20] : memref<8x1xf32, #tpu.memory_space<vmem>>, vector<8x1xf32>
    %30 = vector.broadcast %29 : vector<8x1xf32> to vector<8x512xf32>
    %31 = arith.addf %28, %30 : vector<8x512xf32>
    %c0_21 = arith.constant 0 : index
    %c0_22 = arith.constant 0 : index
    %c0_23 = arith.constant 0 : index
    %32 = vector.load %arg2[%c0_21, %c0_22, %c0_23] : memref<1x8x512xf32, #tpu.memory_space<vmem>>, vector<1x8x512xf32>
    %33 = vector.shape_cast %32 : vector<1x8x512xf32> to vector<8x512xf32>
    %34 = arith.addf %31, %33 : vector<8x512xf32>
    %c0_24 = arith.constant 0 : index
    %c0_25 = arith.constant 0 : index
    %c0_26 = arith.constant 0 : index
    %35 = vector.load %arg9[%c0_24, %c0_25, %c0_26] : memref<1x8x512xf32, #tpu.memory_space<vmem>>, vector<1x8x512xf32>
    %36 = vector.shape_cast %35 : vector<1x8x512xf32> to vector<8x512xf32>
    %37 = vector.shape_cast %34 : vector<8x512xf32> to vector<1x8x512xf32>
    tpu.vector_store %arg9[%c0_24, %c0_25, %c0_26], %37 {strides = array<i32>} : memref<1x8x512xf32, #tpu.memory_space<vmem>>, vector<1x8x512xf32>,
    return
  }
  func.func @transform_0(%arg0: i32, %arg1: i32) -> (i32, i32, i32) {
    %c0_i32 = arith.constant 0 : i32
    %c0_i32_0 = arith.constant 0 : i32
    return %arg0, %c0_i32, %arg1 : i32, i32, i32
  }
  func.func @transform_1(%arg0: i32, %arg1: i32) -> (i32, i32, i32) {
    %c0_i32 = arith.constant 0 : i32
    %c0_i32_0 = arith.constant 0 : i32
    %c0_i32_1 = arith.constant 0 : i32
    return %arg0, %c0_i32, %c0_i32_0 : i32, i32, i32
  }
  func.func @transform_2(%arg0: i32, %arg1: i32) -> (i32, i32, i32) {
    %c0_i32 = arith.constant 0 : i32
    %c0_i32_0 = arith.constant 0 : i32
    %c0_i32_1 = arith.constant 0 : i32
    return %arg0, %c0_i32, %c0_i32_0 : i32, i32, i32
  }
  func.func @transform_3(%arg0: i32, %arg1: i32) -> (i32, i32) {
    %c0_i32 = arith.constant 0 : i32
    %c0_i32_0 = arith.constant 0 : i32
    %c0_i32_1 = arith.constant 0 : i32
    return %c0_i32, %c0_i32_0 : i32, i32
  }
  func.func @transform_4(%arg0: i32, %arg1: i32) -> (i32, i32) {
    %c0_i32 = arith.constant 0 : i32
    %c0_i32_0 = arith.constant 0 : i32
    %c0_i32_1 = arith.constant 0 : i32
    return %c0_i32, %c0_i32_0 : i32, i32
  }
  func.func @transform_5(%arg0: i32, %arg1: i32) -> (i32, i32) {
    %c0_i32 = arith.constant 0 : i32
    %c0_i32_0 = arith.constant 0 : i32
    %c0_i32_1 = arith.constant 0 : i32
    return %c0_i32, %c0_i32_0 : i32, i32
  }
  func.func @transform_6(%arg0: i32, %arg1: i32) -> (i32, i32) {
    %c0_i32 = arith.constant 0 : i32
    %c0_i32_0 = arith.constant 0 : i32
    %c0_i32_1 = arith.constant 0 : i32
    return %c0_i32, %c0_i32_0 : i32, i32
  }
  func.func @transform_7(%arg0: i32, %arg1: i32) -> (i32, i32, i32) {
    %c0_i32 = arith.constant 0 : i32
    %c0_i32_0 = arith.constant 0 : i32
    return %arg0, %c0_i32, %arg1 : i32, i32, i32
  }
}

</mosaic_0001>

<llo_original>
// kernel: _lambda_.1
$region0: #{_lambda_.1}
  #allocation0 [shape = 'u32[]', space=smem, size = 0x4, offset = 0x4, fixed_abs, tag = 'smem constant byte address 0x4 - core index']
  #allocation1 [shape = 'u32[144,128]{1,0:T(1,128)}', space=vmem, size = 0x12000, scoped, tag = 'internal scratch']
  %s0 = inlined_call_operand.vmem [shape: f32[2,8,1024], index: 0, kind: input, shape index: {}]
  %s1 = inlined_call_operand.vmem [shape: bf16[2,168,4], index: 1, kind: input, shape index: {}]
  %s2 = inlined_call_operand.vmem [shape: bf16[2,4,168], index: 2, kind: input, shape index: {}]
  %s3 = inlined_call_operand.vmem [shape: bf16[4,8], index: 3, kind: input, shape index: {}]
  %s4 = inlined_call_operand.vmem [shape: f32[4,1], index: 4, kind: input, shape index: {}]
  %s5 = inlined_call_operand.vmem [shape: bf16[8,4], index: 5, kind: input, shape index: {}]
  %s6 = inlined_call_operand.vmem [shape: f32[8,1], index: 6, kind: input, shape index: {}]
  %s7 = inlined_call_operand.vmem [shape: f32[2,8,1024], index: 7, kind: output, shape index: {}]
  %s8 = sld [smem:[#allocation0]]
  $region61: #{_lambda_.1} parent=0
    _
  %s10 = ssub.s32 1, %s8
  %s11 = scalar_select 0, %s10, %s8
  loop: start=0, step=1, limit=6
  $region2: #{_lambda_.1} parent=0 // loop_pre_header
    _
  $region3: #{_lambda_.1} parent=0 // loop_header
    %s13 = sphi 0, %s17
    %p14 = scmp.ge.s32.totalorder %s13, 6
    %s20 = sphi 0, %s32
    %s21 = sphi 0, %s28
    %s22 = sphi 0, %s20
    %s23 = sphi 0, %s21
    %s24 = sphi 0, %s22
    %s25 = sphi 0, %s23
    %s37 = sphi 0, %s39
    %s40 = sphi 0, %s37
    %s41 = sphi 0, %s40
    %s57 = sphi 0, %s41
    %s63 = sphi 0, %s65
    %s66 = sphi 0, %s63
    %s67 = sphi 0, %s66
    %s83 = sphi 0, %s67
    %s89 = sphi 0, %s91
    %s92 = sphi 0, %s89
    %s93 = sphi 0, %s92
    %s109 = sphi 0, %s93
    %s113 = sphi 0, %s113
    %s115 = sphi 0, %s113
    %s116 = sphi 0, %s115
    %s130 = sphi 0, %s116
    %s134 = sphi 0, %s134
    %s136 = sphi 0, %s134
    %s137 = sphi 0, %s136
    %s151 = sphi 0, %s137
    %s155 = sphi 0, %s155
    %s157 = sphi 0, %s155
    %s158 = sphi 0, %s157
    %s172 = sphi 0, %s158
    %s176 = sphi 0, %s176
    %s178 = sphi 0, %s176
    %s179 = sphi 0, %s178
    %s193 = sphi 0, %s179
    %s201 = sphi 0, %s203
    %s204 = sphi 0, %s201
    %s205 = sphi 0, %s204
    %s221 = sphi 0, %s205
  $region4: #{_lambda_.1} parent=0 // loop_header_branch
    %16 = sbr.rel (%p14) target = $region8
  $region5: #{_lambda_.1} parent=0 // loop_body
    %s18 = ssub.s32 %s13, 1
    %s19 = ssub.s32 %s13, 2
    %s26 = sadd.s32 1, %s21
    %p27 = scmp.ge.s32.totalorder %s26, 2
    %s28 = scalar_select %p27, 0, %s26
    %s29 = sadd.s32 1, %s20
    %s30 = scalar_select %p27, %s29, %s20
    %p31 = scmp.ge.s32.totalorder %s30, 2
    %s32 = scalar_select %p31, 0, %s30
    %s33 = ssub.s32 %s20, %s32
    %s34 = ssub.s32 %s21, %s28
    %s35 = sor.u32 %s33, %s34
    %p36 = scmp.eq.s32.totalorder %s35, 0
    %s38 = sadd.s32 %s37, 1
    %s39 = scalar_select %p36, %s37, %s38
    %p42 = pneg %p36
    %p43 = scmp.eq.s32.totalorder %s13, 3
    %p44 = por %p42, %p43
    %p45 = scmp.ne.s32.totalorder %s37, %s40
    %p46 = scmp.eq.s32.totalorder %s13, 0
    %p47 = por %p45, %p46
    %p48 = scmp.ne.s32.totalorder %s37, %s40
    %p49 = scmp.eq.s32.totalorder %s18, 3
    %p50 = por %p48, %p49
    %p51 = scmp.ne.s32.totalorder %s40, %s41
    %p52 = scmp.eq.s32.totalorder %s18, 0
    %p53 = por %p51, %p52
    %p54 = scmp.ne.s32.totalorder %s40, %s41
    %p55 = scmp.eq.s32.totalorder %s19, 3
    %p56 = por %p54, %p55
    %p58 = scmp.ne.s32.totalorder %s41, %s57
    %p59 = scmp.eq.s32.totalorder %s19, 0
    %p60 = por %p58, %p59
    %s61 = ssub.s32 %s20, %s32
    %p62 = scmp.eq.s32.totalorder %s61, 0
    %s64 = sadd.s32 %s63, 1
    %s65 = scalar_select %p62, %s63, %s64
    %p68 = pneg %p62
    %p69 = scmp.eq.s32.totalorder %s13, 3
    %p70 = por %p68, %p69
    %p71 = scmp.ne.s32.totalorder %s63, %s66
    %p72 = scmp.eq.s32.totalorder %s13, 0
    %p73 = por %p71, %p72
    %p74 = scmp.ne.s32.totalorder %s63, %s66
    %p75 = scmp.eq.s32.totalorder %s18, 3
    %p76 = por %p74, %p75
    %p77 = scmp.ne.s32.totalorder %s66, %s67
    %p78 = scmp.eq.s32.totalorder %s18, 0
    %p79 = por %p77, %p78
    %p80 = scmp.ne.s32.totalorder %s66, %s67
    %p81 = scmp.eq.s32.totalorder %s19, 3
    %p82 = por %p80, %p81
    %p84 = scmp.ne.s32.totalorder %s67, %s83
    %p85 = scmp.eq.s32.totalorder %s19, 0
    %p86 = por %p84, %p85
    %s87 = ssub.s32 %s20, %s32
    %p88 = scmp.eq.s32.totalorder %s87, 0
    %s90 = sadd.s32 %s89, 1
    %s91 = scalar_select %p88, %s89, %s90
    %p94 = pneg %p88
    %p95 = scmp.eq.s32.totalorder %s13, 3
    %p96 = por %p94, %p95
    %p97 = scmp.ne.s32.totalorder %s89, %s92
    %p98 = scmp.eq.s32.totalorder %s13, 0
    %p99 = por %p97, %p98
    %p100 = scmp.ne.s32.totalorder %s89, %s92
    %p101 = scmp.eq.s32.totalorder %s18, 3
    %p102 = por %p100, %p101
    %p103 = scmp.ne.s32.totalorder %s92, %s93
    %p104 = scmp.eq.s32.totalorder %s18, 0
    %p105 = por %p103, %p104
    %p106 = scmp.ne.s32.totalorder %s92, %s93
    %p107 = scmp.eq.s32.totalorder %s19, 3
    %p108 = por %p106, %p107
    %p110 = scmp.ne.s32.totalorder %s93, %s109
    %p111 = scmp.eq.s32.totalorder %s19, 0
    %p112 = por %p110, %p111
    %s114 = sadd.s32 %s113, 1
    %p117 = scmp.eq.s32.totalorder %s13, 3
    %p118 = scmp.ne.s32.totalorder %s113, %s115
    %p119 = scmp.eq.s32.totalorder %s13, 0
    %p120 = por %p118, %p119
    %p121 = scmp.ne.s32.totalorder %s113, %s115
    %p122 = scmp.eq.s32.totalorder %s18, 3
    %p123 = por %p121, %p122
    %p124 = scmp.ne.s32.totalorder %s115, %s116
    %p125 = scmp.eq.s32.totalorder %s18, 0
    %p126 = por %p124, %p125
    %p127 = scmp.ne.s32.totalorder %s115, %s116
    %p128 = scmp.eq.s32.totalorder %s19, 3
    %p129 = por %p127, %p128
    %p131 = scmp.ne.s32.totalorder %s116, %s130
    %p132 = scmp.eq.s32.totalorder %s19, 0
    %p133 = por %p131, %p132
    %s135 = sadd.s32 %s134, 1
    %p138 = scmp.eq.s32.totalorder %s13, 3
    %p139 = scmp.ne.s32.totalorder %s134, %s136
    %p140 = scmp.eq.s32.totalorder %s13, 0
    %p141 = por %p139, %p140
    %p142 = scmp.ne.s32.totalorder %s134, %s136
    %p143 = scmp.eq.s32.totalorder %s18, 3
    %p144 = por %p142, %p143
    %p145 = scmp.ne.s32.totalorder %s136, %s137
    %p146 = scmp.eq.s32.totalorder %s18, 0
    %p147 = por %p145, %p146
    %p148 = scmp.ne.s32.totalorder %s136, %s137
    %p149 = scmp.eq.s32.totalorder %s19, 3
    %p150 = por %p148, %p149
    %p152 = scmp.ne.s32.totalorder %s137, %s151
    %p153 = scmp.eq.s32.totalorder %s19, 0
    %p154 = por %p152, %p153
    %s156 = sadd.s32 %s155, 1
    %p159 = scmp.eq.s32.totalorder %s13, 3
    %p160 = scmp.ne.s32.totalorder %s155, %s157
    %p161 = scmp.eq.s32.totalorder %s13, 0
    %p162 = por %p160, %p161
    %p163 = scmp.ne.s32.totalorder %s155, %s157
    %p164 = scmp.eq.s32.totalorder %s18, 3
    %p165 = por %p163, %p164
    %p166 = scmp.ne.s32.totalorder %s157, %s158
    %p167 = scmp.eq.s32.totalorder %s18, 0
    %p168 = por %p166, %p167
    %p169 = scmp.ne.s32.totalorder %s157, %s158
    %p170 = scmp.eq.s32.totalorder %s19, 3
    %p171 = por %p169, %p170
    %p173 = scmp.ne.s32.totalorder %s158, %s172
    %p174 = scmp.eq.s32.totalorder %s19, 0
    %p175 = por %p173, %p174
    %s177 = sadd.s32 %s176, 1
    %p180 = scmp.eq.s32.totalorder %s13, 3
    %p181 = scmp.ne.s32.totalorder %s176, %s178
    %p182 = scmp.eq.s32.totalorder %s13, 0
    %p183 = por %p181, %p182
    %p184 = scmp.ne.s32.totalorder %s176, %s178
    %p185 = scmp.eq.s32.totalorder %s18, 3
    %p186 = por %p184, %p185
    %p187 = scmp.ne.s32.totalorder %s178, %s179
    %p188 = scmp.eq.s32.totalorder %s18, 0
    %p189 = por %p187, %p188
    %p190 = scmp.ne.s32.totalorder %s178, %s179
    %p191 = scmp.eq.s32.totalorder %s19, 3
    %p192 = por %p190, %p191
    %p194 = scmp.ne.s32.totalorder %s179, %s193
    %p195 = scmp.eq.s32.totalorder %s19, 0
    %p196 = por %p194, %p195
    %s197 = ssub.s32 %s20, %s32
    %s198 = ssub.s32 %s21, %s28
    %s199 = sor.u32 %s197, %s198
    %p200 = scmp.eq.s32.totalorder %s199, 0
    %s202 = sadd.s32 %s201, 1
    %s203 = scalar_select %p200, %s201, %s202
    %p206 = pneg %p200
    %p207 = scmp.eq.s32.totalorder %s13, 3
    %p208 = por %p206, %p207
    %p209 = scmp.ne.s32.totalorder %s201, %s204
    %p210 = scmp.eq.s32.totalorder %s13, 0
    %p211 = por %p209, %p210
    %p212 = scmp.ne.s32.totalorder %s201, %s204
    %p213 = scmp.eq.s32.totalorder %s18, 3
    %p214 = por %p212, %p213
    %p215 = scmp.ne.s32.totalorder %s204, %s205
    %p216 = scmp.eq.s32.totalorder %s18, 0
    %p217 = por %p215, %p216
    %p218 = scmp.ne.s32.totalorder %s204, %s205
    %p219 = scmp.eq.s32.totalorder %s19, 3
    %p220 = por %p218, %p219
    %p222 = scmp.ne.s32.totalorder %s205, %s221
    %p223 = scmp.eq.s32.totalorder %s19, 0
    %p224 = por %p222, %p223
    %p225 = scmp.le.s32.totalorder 1, %s13
    %p226 = scmp.lt.s32.totalorder %s13, 5
    %p227 = pnand %p225, %p226
    %p228 = pneg %p227
    // Predicated region
    $region9: #{_lambda_.1} parent=5 // pred_check
      _
    $region10: #{_lambda_.1} parent=5 // pred_check_branch
      %230 = sbr.rel (%p227) target = $region12
    $region11: #{_lambda_.1} parent=5 // pred_region
      %s231 = ssub.s32 %s13, 1
      // Predicated region
      $region13: #{_lambda_.1} parent=11 // pred_check
        %p232 = pneg %p79
      $region14: #{_lambda_.1} parent=11 // pred_check_branch
        %234 = sbr.rel (%p232) target = $region16
      $region15: #{_lambda_.1} parent=11 // pred_region
        %p235 = scmp.lt.s32.totalorder %s22, 1
        %s236 = scalar_select %p235, %s22, 1
        %s237 = smul.addr %s236, 21
        %s238 = smul.addr %s237, 4
        %s239 = scalar_lea.vmem %s1, %s238
      $region16: #{_lambda_.1} parent=11 // pred_fallthru
        _
      // Predicated region
      $region17: #{_lambda_.1} parent=11 // pred_check
        %p240 = pneg %p105
      $region18: #{_lambda_.1} parent=11 // pred_check_branch
        %242 = sbr.rel (%p240) target = $region20
      $region19: #{_lambda_.1} parent=11 // pred_region
        %p243 = scmp.lt.s32.totalorder %s22, 1
        %s244 = scalar_select %p243, %s22, 1
        %s245 = smul.addr %s244, 2
        %s246 = smul.addr %s245, 2
        %s247 = scalar_lea.vmem %s2, %s246
      $region20: #{_lambda_.1} parent=11 // pred_fallthru
        _
      // Predicated region
      $region21: #{_lambda_.1} parent=11 // pred_check
        %p248 = pneg %p126
      $region22: #{_lambda_.1} parent=11 // pred_check_branch
        %250 = sbr.rel (%p248) target = $region24
      $region23: #{_lambda_.1} parent=11 // pred_region
        _
      $region24: #{_lambda_.1} parent=11 // pred_fallthru
        _
      // Predicated region
      $region25: #{_lambda_.1} parent=11 // pred_check
        %p251 = pneg %p147
      $region26: #{_lambda_.1} parent=11 // pred_check_branch
        %253 = sbr.rel (%p251) target = $region28
      $region27: #{_lambda_.1} parent=11 // pred_region
        _
      $region28: #{_lambda_.1} parent=11 // pred_fallthru
        _
      // Predicated region
      $region29: #{_lambda_.1} parent=11 // pred_check
        %p254 = pneg %p168
      $region30: #{_lambda_.1} parent=11 // pred_check_branch
        %256 = sbr.rel (%p254) target = $region32
      $region31: #{_lambda_.1} parent=11 // pred_region
        _
      $region32: #{_lambda_.1} parent=11 // pred_fallthru
        _
      // Predicated region
      $region33: #{_lambda_.1} parent=11 // pred_check
        %p257 = pneg %p189
      $region34: #{_lambda_.1} parent=11 // pred_check_branch
        %259 = sbr.rel (%p257) target = $region36
      $region35: #{_lambda_.1} parent=11 // pred_region
        _
      $region36: #{_lambda_.1} parent=11 // pred_fallthru
        _
    $region12: #{_lambda_.1} parent=5 // pred_fallthru
      _
    %p260 = scmp.lt.s32.totalorder %s13, 4
    // Predicated region
    $region37: #{_lambda_.1} parent=5 // pred_check
      %p261 = pneg %p260
    $region38: #{_lambda_.1} parent=5 // pred_check_branch
      %263 = sbr.rel (%p261) target = $region40
    $region39: #{_lambda_.1} parent=5 // pred_region
      // Predicated region
      $region41: #{_lambda_.1} parent=39 // pred_check
        %p264 = pneg %p47
      $region42: #{_lambda_.1} parent=39 // pred_check_branch
        %266 = sbr.rel (%p264) target = $region44
      $region43: #{_lambda_.1} parent=39 // pred_region
        %s267 = smul.u32 4, %s21
        %p268 = scmp.lt.s32.totalorder %s20, 1
        %s269 = scalar_select %p268, %s20, 1
        %p270 = scmp.lt.s32.totalorder %s267, 7
        %s271 = scalar_select %p270, %s267, 7
        %s272 = smul.addr %s269, 8
        %s273 = sadd.s32 %s271, %s272
        %s274 = smul.addr %s273, 8
        %s275 = scalar_lea.vmem %s0, %s274
        %s276 = smul.u32 4, %s21
      $region44: #{_lambda_.1} parent=39 // pred_fallthru
        _
    $region40: #{_lambda_.1} parent=5 // pred_fallthru
      _
    %p277 = scmp.le.s32.totalorder 1, %s13
    %p278 = scmp.lt.s32.totalorder %s13, 5
    %p279 = pnand %p277, %p278
    %p280 = pneg %p279
    // Predicated region
    $region45: #{_lambda_.1} parent=5 // pred_check
      _
    $region46: #{_lambda_.1} parent=5 // pred_check_branch
      %282 = sbr.rel (%p279) target = $region48
    $region47: #{_lambda_.1} parent=5 // pred_region
      %s283 = ssub.s32 %s13, 1
      %s284 = smul.u32 4, %s23
      %p285 = scmp.lt.s32.totalorder %s22, 1
      %s286 = scalar_select %p285, %s22, 1
      %p287 = scmp.lt.s32.totalorder %s284, 7
      %s288 = scalar_select %p287, %s284, 7
      %s289 = smul.addr %s286, 8
      %s290 = sadd.s32 %s288, %s289
      %s291 = smul.addr %s290, 8
      %s292 = scalar_lea.vmem %s0, %s291
      %p293 = pneg %p53
      %p294 = pneg %p50
      %p295 = scmp.lt.s32.totalorder %s22, 1
      %s296 = scalar_select %p295, %s22, 1
      %s297 = smul.addr %s296, 21
      %s298 = smul.addr %s297, 4
      %s299 = scalar_lea.vmem %s1, %s298
      %p300 = pneg %p79
      %p301 = pneg %p76
      %p302 = scmp.lt.s32.totalorder %s22, 1
      %s303 = scalar_select %p302, %s22, 1
      %s304 = smul.addr %s303, 2
      %s305 = smul.addr %s304, 2
      %s306 = scalar_lea.vmem %s2, %s305
      %p307 = pneg %p105
      %p308 = pneg %p102
      %p309 = pneg %p126
      %p310 = pneg %p123
      %p311 = pneg %p147
      %p312 = pneg %p144
      %p313 = pneg %p168
      %p314 = pneg %p165
      %p315 = pneg %p189
      %p316 = pneg %p186
      %p317 = pneg %p217
      %p318 = pneg %p214
      %s319 = smul.u32 4, %s23
      %p320 = scmp.lt.s32.totalorder %s22, 1
      %s321 = scalar_select %p320, %s22, 1
      %p322 = scmp.lt.s32.totalorder %s319, 7
      %s323 = scalar_select %p322, %s319, 7
      %s324 = smul.addr %s321, 8
      %s325 = sadd.s32 %s323, %s324
      %s326 = smul.addr %s325, 8
      %s327 = scalar_lea.vmem %s7, %s326
      %s328 = smul.u32 4, %s23
      %p329 = scmp.lt.s32.totalorder %s22, 1
      %s330 = scalar_select %p329, %s22, 1
      %p331 = scmp.lt.s32.totalorder %s328, 7
      %s332 = scalar_select %p331, %s328, 7
      %s333 = smul.addr %s330, 8
      %s334 = sadd.s32 %s332, %s333
      %s335 = smul.addr %s334, 8
      %s336 = scalar_lea.vmem %s0, %s335
      %s337 = smul.u32 4, %s23
      %p338 = scmp.lt.s32.totalorder %s22, 1
      %s339 = scalar_select %p338, %s22, 1
      %s340 = smul.addr %s339, 21
      %s341 = smul.addr %s340, 4
      %s342 = scalar_lea.vmem %s1, %s341
      %p343 = scmp.lt.s32.totalorder %s22, 1
      %s344 = scalar_select %p343, %s22, 1
      %s345 = smul.addr %s344, 2
      %s346 = smul.addr %s345, 2
      %s347 = scalar_lea.vmem %s2, %s346
      %s348 = smul.u32 4, %s23
      %p349 = scmp.lt.s32.totalorder %s22, 1
      %s350 = scalar_select %p349, %s22, 1
      %p351 = scmp.lt.s32.totalorder %s348, 7
      %s352 = scalar_select %p351, %s348, 7
      %s353 = smul.addr %s350, 8
      %s354 = sadd.s32 %s352, %s353
      %s355 = smul.addr %s354, 8
      %s356 = scalar_lea.vmem %s7, %s355
      %s357 = smul.u32 4, %s23
      %v359 = vld [vmem:[%s336] sm:$0xff]
      %v360 = vld [vmem:[%s336 + $0x8] sm:$0xff]
      %v361 = vld [vmem:[%s336 + $0x10] sm:$0xff]
      %v362 = vld [vmem:[%s336 + $0x18] sm:$0xff]
      %v363 = vpack.c.bf16 %v359, %v359
      %v364 = vpack.c.bf16 %v360, %v360
      %v365 = vpack.c.bf16 %v361, %v361
      %v366 = vpack.c.bf16 %v362, %v362
      %v367 = vld [vmem:[%s3] sm:$0x3]
      %v368 = vld [vmem:[%s4] sm:$0xf]
      %370 = vset.pattern.permute.xlu0 0
      %371 = vperm.xlu0 %370, %v368
      %v372 = vpop.permute.xlu0 %371
      %vm374 = vcmask 64512
      %v376 = vsel %vm374, %v367, 0
      %vm378 = vcmask 1043456
      %v380 = vsel %vm378, %v363, 0
      %v383 = vsel %vm378, %v364, 0
      %v386 = vsel %vm378, %v365, 0
      %v389 = vsel %vm378, %v366, 0
      %391 = vmatprep.subr.bf16.mxu0 0
      %392 = vmatpush1.bf16.msra.mxu0 0
      %393 = vmatprep.subr.bf16.mxu0 0
      %394 = vmatpush1.bf16.msra.mxu0 0
      %395 = vmatprep.subr.bf16.mxu0 0
      %396 = vmatpush1.bf16.msra.mxu0 0
      %397 = vmatprep.subr.bf16.mxu0 0
      %398 = vmatpush1.bf16.msra.mxu0 0
      %399 = vmatprep.subr.bf16.mxu0 0
      %400 = vmatpush1.bf16.msra.mxu0 0
      %401 = vmatprep.subr.bf16.mxu0 0
      %402 = vmatpush1.bf16.msra.mxu0 0
      %403 = vmatprep.subr.bf16.mxu0 0
      %404 = vmatpush1.bf16.msra.mxu0 0
      %405 = vmatprep.subr.bf16.mxu0 %v383
      %406 = vmatpush1.bf16.msra.mxu0 %v380
      %407 = vmatprep.subr.bf16.mxu0 0
      %408 = vmatpush2.bf16.msra.mxu0 0
      %409 = vmatprep.subr.bf16.mxu0 0
      %410 = vmatpush2.bf16.msra.mxu0 0
      %411 = vmatprep.subr.bf16.mxu0 0
      %412 = vmatpush2.bf16.msra.mxu0 0
      %413 = vmatprep.subr.bf16.mxu0 0
      %414 = vmatpush2.bf16.msra.mxu0 0
      %415 = vmatprep.subr.bf16.mxu0 0
      %416 = vmatpush2.bf16.msra.mxu0 0
      %417 = vmatprep.subr.bf16.mxu0 0
      %418 = vmatpush2.bf16.msra.mxu0 0
      %419 = vmatprep.subr.bf16.mxu0 0
      %420 = vmatpush2.bf16.msra.mxu0 0
      %421 = vmatprep.subr.bf16.mxu0 0
      %422 = vmatpush2.bf16.msra.mxu0 0
      %423 = vmatprep.mubr.bf16.mxu0 0
      %424 = vmatmul.mubr.bf16.gmra.mxu0 %v376
      %v425 = vpop.f32.mrf.mxu0
      %v426 = vadd.f32 %v372, %v425
      %v427 = vpop.f32.mrf.mxu0
      %v428 = vadd.f32 %v372, %v427
      %v429 = vpop.f32.mrf.mxu0
      %v430 = vpop.f32.mrf.mxu0
      %431 = vdwg.mxu0
      %432 = vmatprep.subr.bf16.mxu0 0
      %433 = vmatpush1.bf16.msra.mxu0 0
      %434 = vmatprep.subr.bf16.mxu0 0
      %435 = vmatpush1.bf16.msra.mxu0 0
      %436 = vmatprep.subr.bf16.mxu0 0
      %437 = vmatpush1.bf16.msra.mxu0 0
      %438 = vmatprep.subr.bf16.mxu0 0
      %439 = vmatpush1.bf16.msra.mxu0 0
      %440 = vmatprep.subr.bf16.mxu0 0
      %441 = vmatpush1.bf16.msra.mxu0 0
      %442 = vmatprep.subr.bf16.mxu0 0
      %443 = vmatpush1.bf16.msra.mxu0 0
      %444 = vmatprep.subr.bf16.mxu0 0
      %445 = vmatpush1.bf16.msra.mxu0 0
      %446 = vmatprep.subr.bf16.mxu0 %v389
      %447 = vmatpush1.bf16.msra.mxu0 %v386
      %448 = vmatprep.subr.bf16.mxu0 0
      %449 = vmatpush2.bf16.msra.mxu0 0
      %450 = vmatprep.subr.bf16.mxu0 0
      %451 = vmatpush2.bf16.msra.mxu0 0
      %452 = vmatprep.subr.bf16.mxu0 0
      %453 = vmatpush2.bf16.msra.mxu0 0
      %454 = vmatprep.subr.bf16.mxu0 0
      %455 = vmatpush2.bf16.msra.mxu0 0
      %456 = vmatprep.subr.bf16.mxu0 0
      %457 = vmatpush2.bf16.msra.mxu0 0
      %458 = vmatprep.subr.bf16.mxu0 0
      %459 = vmatpush2.bf16.msra.mxu0 0
      %460 = vmatprep.subr.bf16.mxu0 0
      %461 = vmatpush2.bf16.msra.mxu0 0
      %462 = vmatprep.subr.bf16.mxu0 0
      %463 = vmatpush2.bf16.msra.mxu0 0
      %464 = vmatprep.mubr.bf16.mxu0 0
      %465 = vmatmul.mubr.bf16.gmra.mxu0 %v376
      %v466 = vpop.f32.mrf.mxu0
      %v467 = vadd.f32 %v372, %v466
      %v468 = vpop.f32.mrf.mxu0
      %v469 = vadd.f32 %v372, %v468
      %v470 = vpop.f32.mrf.mxu0
      %v471 = vpop.f32.mrf.mxu0
      %472 = vdwg.mxu0
      %v473 = vld [vmem:[%s342] sm:$0xf]
      %v474 = vld [vmem:[%s342 + $0x4] sm:$0xf]
      %v475 = vld [vmem:[%s342 + $0x8] sm:$0xf]
      %v476 = vld [vmem:[%s342 + $0xc] sm:$0xf]
      %v477 = vld [vmem:[%s342 + $0x10] sm:$0xf]
      %v478 = vld [vmem:[%s342 + $0x14] sm:$0xf]
      %v479 = vld [vmem:[%s342 + $0x18] sm:$0xf]
      %v480 = vld [vmem:[%s342 + $0x1c] sm:$0xf]
      %v481 = vld [vmem:[%s342 + $0x20] sm:$0xf]
      %v482 = vld [vmem:[%s342 + $0x24] sm:$0xf]
      %v483 = vld [vmem:[%s342 + $0x28] sm:$0xf]
      %v484 = vld [vmem:[%s342 + $0x2c] sm:$0xf]
      %v485 = vld [vmem:[%s342 + $0x30] sm:$0xf]
      %v486 = vld [vmem:[%s342 + $0x34] sm:$0xf]
      %v487 = vld [vmem:[%s342 + $0x38] sm:$0xf]
      %v488 = vld [vmem:[%s342 + $0x3c] sm:$0xf]
      %v489 = vld [vmem:[%s342 + $0x40] sm:$0xf]
      %v490 = vld [vmem:[%s342 + $0x44] sm:$0xf]
      %v491 = vld [vmem:[%s342 + $0x48] sm:$0xf]
      %v492 = vld [vmem:[%s342 + $0x4c] sm:$0xf]
      %v493 = vld [vmem:[%s342 + $0x50] sm:$0xf]
      %v494 = vpack.c.bf16 %v426, %v426
      %v495 = vpack.c.bf16 %v428, %v428
      %v496 = vpack.c.bf16 %v467, %v467
      %v497 = vpack.c.bf16 %v469, %v469
      %v519 = vunpack.c.l.b16 %v473
      %v520 = vunpack.c.l.b16 %v474
      %v521 = vunpack.c.l.b16 %v475
      %v522 = vunpack.c.l.b16 %v476
      %v523 = vunpack.c.l.b16 %v477
      %v524 = vunpack.c.l.b16 %v478
      %v525 = vunpack.c.l.b16 %v479
      %v526 = vunpack.c.l.b16 %v480
      %v527 = vunpack.c.l.b16 %v481
      %v528 = vunpack.c.l.b16 %v482
      %v529 = vunpack.c.l.b16 %v483
      %v530 = vunpack.c.l.b16 %v484
      %v531 = vunpack.c.l.b16 %v485
      %v532 = vunpack.c.l.b16 %v486
      %v533 = vunpack.c.l.b16 %v487
      %v534 = vunpack.c.l.b16 %v488
      %v535 = vunpack.c.l.b16 %v489
      %v536 = vunpack.c.l.b16 %v490
      %v537 = vunpack.c.l.b16 %v491
      %v538 = vunpack.c.l.b16 %v492
      %v539 = vunpack.c.l.b16 %v493
      %v540 = vpack.c.b16 %v520, %v519
      %v541 = vpack.c.b16 %v522, %v521
      %v542 = vpack.c.b16 %v524, %v523
      %v543 = vpack.c.b16 %v526, %v525
      %v544 = vpack.c.b16 %v528, %v527
      %v545 = vpack.c.b16 %v530, %v529
      %v546 = vpack.c.b16 %v532, %v531
      %v547 = vpack.c.b16 %v534, %v533
      %v548 = vpack.c.b16 %v536, %v535
      %v549 = vpack.c.b16 %v538, %v537
      %v550 = vpack.c.b16 %v539, %v539
      %vm551 = vcmask 31744
      %v553 = vsel %vm551, %v540, 0
      %v556 = vsel %vm551, %v541, 0
      %v559 = vsel %vm551, %v542, 0
      %v562 = vsel %vm551, %v543, 0
      %v565 = vsel %vm551, %v544, 0
      %v568 = vsel %vm551, %v545, 0
      %v571 = vsel %vm551, %v546, 0
      %v574 = vsel %vm551, %v547, 0
      %v577 = vsel %vm551, %v548, 0
      %v580 = vsel %vm551, %v549, 0
      %v583 = vsel %vm551, %v550, 0
      %vm585 = vcmask 1041408
      %v587 = vsel %vm585, %v494, 0
      %v590 = vsel %vm585, %v495, 0
      %v593 = vsel %vm585, %v496, 0
      %v596 = vsel %vm585, %v497, 0
      %598 = vmatprep.subr.bf16.mxu0 0
      %599 = vmatpush1.bf16.msra.mxu0 0
      %600 = vmatprep.subr.bf16.mxu0 0
      %601 = vmatpush1.bf16.msra.mxu0 0
      %602 = vmatprep.subr.bf16.mxu0 0
      %603 = vmatpush1.bf16.msra.mxu0 0
      %604 = vmatprep.subr.bf16.mxu0 0
      %605 = vmatpush1.bf16.msra.mxu0 0
      %606 = vmatprep.subr.bf16.mxu0 0
      %607 = vmatpush1.bf16.msra.mxu0 0
      %608 = vmatprep.subr.bf16.mxu0 0
      %609 = vmatpush1.bf16.msra.mxu0 0
      %610 = vmatprep.subr.bf16.mxu0 0
      %611 = vmatpush1.bf16.msra.mxu0 0
      %612 = vmatprep.subr.bf16.mxu0 %v590
      %613 = vmatpush1.bf16.msra.mxu0 %v587
      %614 = vmatprep.subr.bf16.mxu0 0
      %615 = vmatpush2.bf16.msra.mxu0 0
      %616 = vmatprep.subr.bf16.mxu0 0
      %617 = vmatpush2.bf16.msra.mxu0 0
      %618 = vmatprep.subr.bf16.mxu0 0
      %619 = vmatpush2.bf16.msra.mxu0 0
      %620 = vmatprep.subr.bf16.mxu0 0
      %621 = vmatpush2.bf16.msra.mxu0 0
      %622 = vmatprep.subr.bf16.mxu0 0
      %623 = vmatpush2.bf16.msra.mxu0 0
      %624 = vmatprep.subr.bf16.mxu0 0
      %625 = vmatpush2.bf16.msra.mxu0 0
      %626 = vmatprep.subr.bf16.mxu0 0
      %627 = vmatpush2.bf16.msra.mxu0 0
      %628 = vmatprep.subr.bf16.mxu0 0
      %629 = vmatpush2.bf16.msra.mxu0 0
      %630 = vmatprep.mubr.bf16.mxu0 0
      %631 = vmatmul.mubr.bf16.gmra.mxu0 %v553
      %v632 = vpop.f32.mrf.mxu0
      %v633 = vadd.f32 0.0, %v632
      %v634 = vpop.f32.mrf.mxu0
      %v635 = vadd.f32 0.0, %v634
      %v636 = vpop.f32.mrf.mxu0
      %v637 = vadd.f32 0.0, %v636
      %v638 = vpop.f32.mrf.mxu0
      %v639 = vadd.f32 0.0, %v638
      %640 = vmatprep.mubr.bf16.mxu0 0
      %641 = vmatmul.mubr.bf16.gmra.mxu0 %v556
      %v642 = vpop.f32.mrf.mxu0
      %v643 = vadd.f32 0.0, %v642
      %v644 = vpop.f32.mrf.mxu0
      %v645 = vadd.f32 0.0, %v644
      %v646 = vpop.f32.mrf.mxu0
      %v647 = vadd.f32 0.0, %v646
      %v648 = vpop.f32.mrf.mxu0
      %v649 = vadd.f32 0.0, %v648
      %650 = vmatprep.mubr.bf16.mxu0 0
      %651 = vmatmul.mubr.bf16.gmra.mxu0 %v559
      %v652 = vpop.f32.mrf.mxu0
      %v653 = vadd.f32 0.0, %v652
      %v654 = vpop.f32.mrf.mxu0
      %v655 = vadd.f32 0.0, %v654
      %v656 = vpop.f32.mrf.mxu0
      %v657 = vadd.f32 0.0, %v656
      %v658 = vpop.f32.mrf.mxu0
      %v659 = vadd.f32 0.0, %v658
      %660 = vmatprep.mubr.bf16.mxu0 0
      %661 = vmatmul.mubr.bf16.gmra.mxu0 %v562
      %v662 = vpop.f32.mrf.mxu0
      %v663 = vadd.f32 0.0, %v662
      %v664 = vpop.f32.mrf.mxu0
      %v665 = vadd.f32 0.0, %v664
      %v666 = vpop.f32.mrf.mxu0
      %v667 = vadd.f32 0.0, %v666
      %v668 = vpop.f32.mrf.mxu0
      %v669 = vadd.f32 0.0, %v668
      %670 = vmatprep.mubr.bf16.mxu0 0
      %671 = vmatmul.mubr.bf16.gmra.mxu0 %v565
      %v672 = vpop.f32.mrf.mxu0
      %v673 = vadd.f32 0.0, %v672
      %v674 = vpop.f32.mrf.mxu0
      %v675 = vadd.f32 0.0, %v674
      %v676 = vpop.f32.mrf.mxu0
      %v677 = vadd.f32 0.0, %v676
      %v678 = vpop.f32.mrf.mxu0
      %v679 = vadd.f32 0.0, %v678
      %680 = vmatprep.mubr.bf16.mxu0 0
      %681 = vmatmul.mubr.bf16.gmra.mxu0 %v568
      %v682 = vpop.f32.mrf.mxu0
      %v683 = vadd.f32 0.0, %v682
      %v684 = vpop.f32.mrf.mxu0
      %v685 = vadd.f32 0.0, %v684
      %v686 = vpop.f32.mrf.mxu0
      %v687 = vadd.f32 0.0, %v686
      %v688 = vpop.f32.mrf.mxu0
      %v689 = vadd.f32 0.0, %v688
      %690 = vmatprep.mubr.bf16.mxu0 0
      %691 = vmatmul.mubr.bf16.gmra.mxu0 %v571
      %v692 = vpop.f32.mrf.mxu0
      %v693 = vadd.f32 0.0, %v692
      %v694 = vpop.f32.mrf.mxu0
      %v695 = vadd.f32 0.0, %v694
      %v696 = vpop.f32.mrf.mxu0
      %v697 = vadd.f32 0.0, %v696
      %v698 = vpop.f32.mrf.mxu0
      %v699 = vadd.f32 0.0, %v698
      %700 = vmatprep.mubr.bf16.mxu0 0
      %701 = vmatmul.mubr.bf16.gmra.mxu0 %v574
      %v702 = vpop.f32.mrf.mxu0
      %v703 = vadd.f32 0.0, %v702
      %v704 = vpop.f32.mrf.mxu0
      %v705 = vadd.f32 0.0, %v704
      %v706 = vpop.f32.mrf.mxu0
      %v707 = vadd.f32 0.0, %v706
      %v708 = vpop.f32.mrf.mxu0
      %v709 = vadd.f32 0.0, %v708
      %710 = vmatprep.mubr.bf16.mxu0 0
      %711 = vmatmul.mubr.bf16.gmra.mxu0 %v577
      %v712 = vpop.f32.mrf.mxu0
      %v713 = vadd.f32 0.0, %v712
      %v714 = vpop.f32.mrf.mxu0
      %v715 = vadd.f32 0.0, %v714
      %v716 = vpop.f32.mrf.mxu0
      %v717 = vadd.f32 0.0, %v716
      %v718 = vpop.f32.mrf.mxu0
      %v719 = vadd.f32 0.0, %v718
      %720 = vmatprep.mubr.bf16.mxu0 0
      %721 = vmatmul.mubr.bf16.gmra.mxu0 %v580
      %v722 = vpop.f32.mrf.mxu0
      %v723 = vadd.f32 0.0, %v722
      %v724 = vpop.f32.mrf.mxu0
      %v725 = vadd.f32 0.0, %v724
      %v726 = vpop.f32.mrf.mxu0
      %v727 = vadd.f32 0.0, %v726
      %v728 = vpop.f32.mrf.mxu0
      %v729 = vadd.f32 0.0, %v728
      %730 = vmatprep.mubr.bf16.mxu0 0
      %731 = vmatmul.mubr.bf16.gmra.mxu0 %v583
      %v732 = vpop.f32.mrf.mxu0
      %v733 = vadd.f32 0.0, %v732
      %v734 = vpop.f32.mrf.mxu0
      %v735 = vadd.f32 0.0, %v734
      %v736 = vpop.f32.mrf.mxu0
      %v737 = vpop.f32.mrf.mxu0
      %738 = vdwg.mxu0
      %739 = vmatprep.subr.bf16.mxu0 0
      %740 = vmatpush1.bf16.msra.mxu0 0
      %741 = vmatprep.subr.bf16.mxu0 0
      %742 = vmatpush1.bf16.msra.mxu0 0
      %743 = vmatprep.subr.bf16.mxu0 0
      %744 = vmatpush1.bf16.msra.mxu0 0
      %745 = vmatprep.subr.bf16.mxu0 0
      %746 = vmatpush1.bf16.msra.mxu0 0
      %747 = vmatprep.subr.bf16.mxu0 0
      %748 = vmatpush1.bf16.msra.mxu0 0
      %749 = vmatprep.subr.bf16.mxu0 0
      %750 = vmatpush1.bf16.msra.mxu0 0
      %751 = vmatprep.subr.bf16.mxu0 0
      %752 = vmatpush1.bf16.msra.mxu0 0
      %753 = vmatprep.subr.bf16.mxu0 %v596
      %754 = vmatpush1.bf16.msra.mxu0 %v593
      %755 = vmatprep.subr.bf16.mxu0 0
      %756 = vmatpush2.bf16.msra.mxu0 0
      %757 = vmatprep.subr.bf16.mxu0 0
      %758 = vmatpush2.bf16.msra.mxu0 0
      %759 = vmatprep.subr.bf16.mxu0 0
      %760 = vmatpush2.bf16.msra.mxu0 0
      %761 = vmatprep.subr.bf16.mxu0 0
      %762 = vmatpush2.bf16.msra.mxu0 0
      %763 = vmatprep.subr.bf16.mxu0 0
      %764 = vmatpush2.bf16.msra.mxu0 0
      %765 = vmatprep.subr.bf16.mxu0 0
      %766 = vmatpush2.bf16.msra.mxu0 0
      %767 = vmatprep.subr.bf16.mxu0 0
      %768 = vmatpush2.bf16.msra.mxu0 0
      %769 = vmatprep.subr.bf16.mxu0 0
      %770 = vmatpush2.bf16.msra.mxu0 0
      %771 = vmatprep.mubr.bf16.mxu0 0
      %772 = vmatmul.mubr.bf16.gmra.mxu0 %v553
      %v773 = vpop.f32.mrf.mxu0
      %v774 = vadd.f32 0.0, %v773
      %v775 = vpop.f32.mrf.mxu0
      %v776 = vadd.f32 0.0, %v775
      %v777 = vpop.f32.mrf.mxu0
      %v778 = vadd.f32 0.0, %v777
      %v779 = vpop.f32.mrf.mxu0
      %v780 = vadd.f32 0.0, %v779
      %781 = vmatprep.mubr.bf16.mxu0 0
      %782 = vmatmul.mubr.bf16.gmra.mxu0 %v556
      %v783 = vpop.f32.mrf.mxu0
      %v784 = vadd.f32 0.0, %v783
      %v785 = vpop.f32.mrf.mxu0
      %v786 = vadd.f32 0.0, %v785
      %v787 = vpop.f32.mrf.mxu0
      %v788 = vadd.f32 0.0, %v787
      %v789 = vpop.f32.mrf.mxu0
      %v790 = vadd.f32 0.0, %v789
      %791 = vmatprep.mubr.bf16.mxu0 0
      %792 = vmatmul.mubr.bf16.gmra.mxu0 %v559
      %v793 = vpop.f32.mrf.mxu0
      %v794 = vadd.f32 0.0, %v793
      %v795 = vpop.f32.mrf.mxu0
      %v796 = vadd.f32 0.0, %v795
      %v797 = vpop.f32.mrf.mxu0
      %v798 = vadd.f32 0.0, %v797
      %v799 = vpop.f32.mrf.mxu0
      %v800 = vadd.f32 0.0, %v799
      %801 = vmatprep.mubr.bf16.mxu0 0
      %802 = vmatmul.mubr.bf16.gmra.mxu0 %v562
      %v803 = vpop.f32.mrf.mxu0
      %v804 = vadd.f32 0.0, %v803
      %v805 = vpop.f32.mrf.mxu0
      %v806 = vadd.f32 0.0, %v805
      %v807 = vpop.f32.mrf.mxu0
      %v808 = vadd.f32 0.0, %v807
      %v809 = vpop.f32.mrf.mxu0
      %v810 = vadd.f32 0.0, %v809
      %811 = vmatprep.mubr.bf16.mxu0 0
      %812 = vmatmul.mubr.bf16.gmra.mxu0 %v565
      %v813 = vpop.f32.mrf.mxu0
      %v814 = vadd.f32 0.0, %v813
      %v815 = vpop.f32.mrf.mxu0
      %v816 = vadd.f32 0.0, %v815
      %v817 = vpop.f32.mrf.mxu0
      %v818 = vadd.f32 0.0, %v817
      %v819 = vpop.f32.mrf.mxu0
      %v820 = vadd.f32 0.0, %v819
      %821 = vmatprep.mubr.bf16.mxu0 0
      %822 = vmatmul.mubr.bf16.gmra.mxu0 %v568
      %v823 = vpop.f32.mrf.mxu0
      %v824 = vadd.f32 0.0, %v823
      %v825 = vpop.f32.mrf.mxu0
      %v826 = vadd.f32 0.0, %v825
      %v827 = vpop.f32.mrf.mxu0
      %v828 = vadd.f32 0.0, %v827
      %v829 = vpop.f32.mrf.mxu0
      %v830 = vadd.f32 0.0, %v829
      %831 = vmatprep.mubr.bf16.mxu0 0
      %832 = vmatmul.mubr.bf16.gmra.mxu0 %v571
      %v833 = vpop.f32.mrf.mxu0
      %v834 = vadd.f32 0.0, %v833
      %v835 = vpop.f32.mrf.mxu0
      %v836 = vadd.f32 0.0, %v835
      %v837 = vpop.f32.mrf.mxu0
      %v838 = vadd.f32 0.0, %v837
      %v839 = vpop.f32.mrf.mxu0
      %v840 = vadd.f32 0.0, %v839
      %841 = vmatprep.mubr.bf16.mxu0 0
      %842 = vmatmul.mubr.bf16.gmra.mxu0 %v574
      %v843 = vpop.f32.mrf.mxu0
      %v844 = vadd.f32 0.0, %v843
      %v845 = vpop.f32.mrf.mxu0
      %v846 = vadd.f32 0.0, %v845
      %v847 = vpop.f32.mrf.mxu0
      %v848 = vadd.f32 0.0, %v847
      %v849 = vpop.f32.mrf.mxu0
      %v850 = vadd.f32 0.0, %v849
      %851 = vmatprep.mubr.bf16.mxu0 0
      %852 = vmatmul.mubr.bf16.gmra.mxu0 %v577
      %v853 = vpop.f32.mrf.mxu0
      %v854 = vadd.f32 0.0, %v853
      %v855 = vpop.f32.mrf.mxu0
      %v856 = vadd.f32 0.0, %v855
      %v857 = vpop.f32.mrf.mxu0
      %v858 = vadd.f32 0.0, %v857
      %v859 = vpop.f32.mrf.mxu0
      %v860 = vadd.f32 0.0, %v859
      %861 = vmatprep.mubr.bf16.mxu0 0
      %862 = vmatmul.mubr.bf16.gmra.mxu0 %v580
      %v863 = vpop.f32.mrf.mxu0
      %v864 = vadd.f32 0.0, %v863
      %v865 = vpop.f32.mrf.mxu0
      %v866 = vadd.f32 0.0, %v865
      %v867 = vpop.f32.mrf.mxu0
      %v868 = vadd.f32 0.0, %v867
      %v869 = vpop.f32.mrf.mxu0
      %v870 = vadd.f32 0.0, %v869
      %871 = vmatprep.mubr.bf16.mxu0 0
      %872 = vmatmul.mubr.bf16.gmra.mxu0 %v583
      %v873 = vpop.f32.mrf.mxu0
      %v874 = vadd.f32 0.0, %v873
      %v875 = vpop.f32.mrf.mxu0
      %v876 = vadd.f32 0.0, %v875
      %v877 = vpop.f32.mrf.mxu0
      %v878 = vpop.f32.mrf.mxu0
      %879 = vdwg.mxu0
      %v880 = vmax.f32 %v633, %v637
      %v881 = vmax.f32 %v880, %v643
      %v882 = vmax.f32 %v881, %v647
      %v883 = vmax.f32 %v882, %v653
      %v884 = vmax.f32 %v883, %v657
      %v885 = vmax.f32 %v884, %v663
      %v886 = vmax.f32 %v885, %v667
      %v887 = vmax.f32 %v886, %v673
      %v888 = vmax.f32 %v887, %v677
      %v889 = vmax.f32 %v888, %v683
      %v890 = vmax.f32 %v889, %v687
      %v891 = vmax.f32 %v890, %v693
      %v892 = vmax.f32 %v891, %v697
      %v893 = vmax.f32 %v892, %v703
      %v894 = vmax.f32 %v893, %v707
      %v895 = vmax.f32 %v894, %v713
      %v896 = vmax.f32 %v895, %v717
      %v897 = vmax.f32 %v896, %v723
      %v898 = vmax.f32 %v897, %v727
      %v899 = vmax.f32 %v898, %v733
      %v900 = vrot.slane %v899, 4
      %v901 = vmax.f32 %v899, %v900
      %v902 = vrot.slane %v901, 2
      %v903 = vmax.f32 %v901, %v902
      %v904 = vrot.slane %v903, 1
      %v905 = vmax.f32 %v903, %v904
      %v906 = vmax.f32 %v635, %v639
      %v907 = vmax.f32 %v906, %v645
      %v908 = vmax.f32 %v907, %v649
      %v909 = vmax.f32 %v908, %v655
      %v910 = vmax.f32 %v909, %v659
      %v911 = vmax.f32 %v910, %v665
      %v912 = vmax.f32 %v911, %v669
      %v913 = vmax.f32 %v912, %v675
      %v914 = vmax.f32 %v913, %v679
      %v915 = vmax.f32 %v914, %v685
      %v916 = vmax.f32 %v915, %v689
      %v917 = vmax.f32 %v916, %v695
      %v918 = vmax.f32 %v917, %v699
      %v919 = vmax.f32 %v918, %v705
      %v920 = vmax.f32 %v919, %v709
      %v921 = vmax.f32 %v920, %v715
      %v922 = vmax.f32 %v921, %v719
      %v923 = vmax.f32 %v922, %v725
      %v924 = vmax.f32 %v923, %v729
      %v925 = vmax.f32 %v924, %v735
      %v926 = vrot.slane %v925, 4
      %v927 = vmax.f32 %v925, %v926
      %v928 = vrot.slane %v927, 2
      %v929 = vmax.f32 %v927, %v928
      %v930 = vrot.slane %v929, 1
      %v931 = vmax.f32 %v929, %v930
      %v932 = vmax.f32 %v774, %v778
      %v933 = vmax.f32 %v932, %v784
      %v934 = vmax.f32 %v933, %v788
      %v935 = vmax.f32 %v934, %v794
      %v936 = vmax.f32 %v935, %v798
      %v937 = vmax.f32 %v936, %v804
      %v938 = vmax.f32 %v937, %v808
      %v939 = vmax.f32 %v938, %v814
      %v940 = vmax.f32 %v939, %v818
      %v941 = vmax.f32 %v940, %v824
      %v942 = vmax.f32 %v941, %v828
      %v943 = vmax.f32 %v942, %v834
      %v944 = vmax.f32 %v943, %v838
      %v945 = vmax.f32 %v944, %v844
      %v946 = vmax.f32 %v945, %v848
      %v947 = vmax.f32 %v946, %v854
      %v948 = vmax.f32 %v947, %v858
      %v949 = vmax.f32 %v948, %v864
      %v950 = vmax.f32 %v949, %v868
      %v951 = vmax.f32 %v950, %v874
      %v952 = vrot.slane %v951, 4
      %v953 = vmax.f32 %v951, %v952
      %v954 = vrot.slane %v953, 2
      %v955 = vmax.f32 %v953, %v954
      %v956 = vrot.slane %v955, 1
      %v957 = vmax.f32 %v955, %v956
      %v958 = vmax.f32 %v776, %v780
      %v959 = vmax.f32 %v958, %v786
      %v960 = vmax.f32 %v959, %v790
      %v961 = vmax.f32 %v960, %v796
      %v962 = vmax.f32 %v961, %v800
      %v963 = vmax.f32 %v962, %v806
      %v964 = vmax.f32 %v963, %v810
      %v965 = vmax.f32 %v964, %v816
      %v966 = vmax.f32 %v965, %v820
      %v967 = vmax.f32 %v966, %v826
      %v968 = vmax.f32 %v967, %v830
      %v969 = vmax.f32 %v968, %v836
      %v970 = vmax.f32 %v969, %v840
      %v971 = vmax.f32 %v970, %v846
      %v972 = vmax.f32 %v971, %v850
      %v973 = vmax.f32 %v972, %v856
      %v974 = vmax.f32 %v973, %v860
      %v975 = vmax.f32 %v974, %v866
      %v976 = vmax.f32 %v975, %v870
      %v977 = vmax.f32 %v976, %v876
      %v978 = vrot.slane %v977, 4
      %v979 = vmax.f32 %v977, %v978
      %v980 = vrot.slane %v979, 2
      %v981 = vmax.f32 %v979, %v980
      %v982 = vrot.slane %v981, 1
      %v983 = vmax.f32 %v981, %v982
      %v984 = vsub.f32 %v633, %v905
      %v985 = vsub.f32 %v635, %v931
      %v986 = vsub.f32 %v774, %v957
      %v987 = vsub.f32 %v776, %v983
      %v988 = vsub.f32 %v637, %v905
      %v989 = vsub.f32 %v639, %v931
      %v990 = vsub.f32 %v778, %v957
      %v991 = vsub.f32 %v780, %v983
      %v992 = vsub.f32 %v643, %v905
      %v993 = vsub.f32 %v645, %v931
      %v994 = vsub.f32 %v784, %v957
      %v995 = vsub.f32 %v786, %v983
      %v996 = vsub.f32 %v647, %v905
      %v997 = vsub.f32 %v649, %v931
      %v998 = vsub.f32 %v788, %v957
      %v999 = vsub.f32 %v790, %v983
      %v1000 = vsub.f32 %v653, %v905
      %v1001 = vsub.f32 %v655, %v931
      %v1002 = vsub.f32 %v794, %v957
      %v1003 = vsub.f32 %v796, %v983
      %v1004 = vsub.f32 %v657, %v905
      %v1005 = vsub.f32 %v659, %v931
      %v1006 = vsub.f32 %v798, %v957
      %v1007 = vsub.f32 %v800, %v983
      %v1008 = vsub.f32 %v663, %v905
      %v1009 = vsub.f32 %v665, %v931
      %v1010 = vsub.f32 %v804, %v957
      %v1011 = vsub.f32 %v806, %v983
      %v1012 = vsub.f32 %v667, %v905
      %v1013 = vsub.f32 %v669, %v931
      %v1014 = vsub.f32 %v808, %v957
      %v1015 = vsub.f32 %v810, %v983
      %v1016 = vsub.f32 %v673, %v905
      %v1017 = vsub.f32 %v675, %v931
      %v1018 = vsub.f32 %v814, %v957
      %v1019 = vsub.f32 %v816, %v983
      %v1020 = vsub.f32 %v677, %v905
      %v1021 = vsub.f32 %v679, %v931
      %v1022 = vsub.f32 %v818, %v957
      %v1023 = vsub.f32 %v820, %v983
      %v1024 = vsub.f32 %v683, %v905
      %v1025 = vsub.f32 %v685, %v931
      %v1026 = vsub.f32 %v824, %v957
      %v1027 = vsub.f32 %v826, %v983
      %v1028 = vsub.f32 %v687, %v905
      %v1029 = vsub.f32 %v689, %v931
      %v1030 = vsub.f32 %v828, %v957
      %v1031 = vsub.f32 %v830, %v983
      %v1032 = vsub.f32 %v693, %v905
      %v1033 = vsub.f32 %v695, %v931
      %v1034 = vsub.f32 %v834, %v957
      %v1035 = vsub.f32 %v836, %v983
      %v1036 = vsub.f32 %v697, %v905
      %v1037 = vsub.f32 %v699, %v931
      %v1038 = vsub.f32 %v838, %v957
      %v1039 = vsub.f32 %v840, %v983
      %v1040 = vsub.f32 %v703, %v905
      %v1041 = vsub.f32 %v705, %v931
      %v1042 = vsub.f32 %v844, %v957
      %v1043 = vsub.f32 %v846, %v983
      %v1044 = vsub.f32 %v707, %v905
      %v1045 = vsub.f32 %v709, %v931
      %v1046 = vsub.f32 %v848, %v957
      %v1047 = vsub.f32 %v850, %v983
      %v1048 = vsub.f32 %v713, %v905
      %v1049 = vsub.f32 %v715, %v931
      %v1050 = vsub.f32 %v854, %v957
      %v1051 = vsub.f32 %v856, %v983
      %v1052 = vsub.f32 %v717, %v905
      %v1053 = vsub.f32 %v719, %v931
      %v1054 = vsub.f32 %v858, %v957
      %v1055 = vsub.f32 %v860, %v983
      %v1056 = vsub.f32 %v723, %v905
      %v1057 = vsub.f32 %v725, %v931
      %v1058 = vsub.f32 %v864, %v957
      %v1059 = vsub.f32 %v866, %v983
      %v1060 = vsub.f32 %v727, %v905
      %v1061 = vsub.f32 %v729, %v931
      %v1062 = vsub.f32 %v868, %v957
      %v1063 = vsub.f32 %v870, %v983
      %v1064 = vsub.f32 %v733, %v905
      %v1065 = vsub.f32 %v735, %v931
      %v1066 = vsub.f32 %v874, %v957
      %v1067 = vsub.f32 %v876, %v983
      %v1068 = vmul.f32 %v984, 1.442695
      %v1069 = vpow.pop %v1068
      %v1070 = vmul.f32 %v985, 1.442695
      %v1071 = vpow.pop %v1070
      %v1072 = vmul.f32 %v986, 1.442695
      %v1073 = vpow.pop %v1072
      %v1074 = vmul.f32 %v987, 1.442695
      %v1075 = vpow.pop %v1074
      %v1076 = vmul.f32 %v988, 1.442695
      %v1077 = vpow.pop %v1076
      %v1078 = vmul.f32 %v989, 1.442695
      %v1079 = vpow.pop %v1078
      %v1080 = vmul.f32 %v990, 1.442695
      %v1081 = vpow.pop %v1080
      %v1082 = vmul.f32 %v991, 1.442695
      %v1083 = vpow.pop %v1082
      %v1084 = vmul.f32 %v992, 1.442695
      %v1085 = vpow.pop %v1084
      %v1086 = vmul.f32 %v993, 1.442695
      %v1087 = vpow.pop %v1086
      %v1088 = vmul.f32 %v994, 1.442695
      %v1089 = vpow.pop %v1088
      %v1090 = vmul.f32 %v995, 1.442695
      %v1091 = vpow.pop %v1090
      %v1092 = vmul.f32 %v996, 1.442695
      %v1093 = vpow.pop %v1092
      %v1094 = vmul.f32 %v997, 1.442695
      %v1095 = vpow.pop %v1094
      %v1096 = vmul.f32 %v998, 1.442695
      %v1097 = vpow.pop %v1096
      %v1098 = vmul.f32 %v999, 1.442695
      %v1099 = vpow.pop %v1098
      %v1100 = vmul.f32 %v1000, 1.442695
      %v1101 = vpow.pop %v1100
      %v1102 = vmul.f32 %v1001, 1.442695
      %v1103 = vpow.pop %v1102
      %v1104 = vmul.f32 %v1002, 1.442695
      %v1105 = vpow.pop %v1104
      %v1106 = vmul.f32 %v1003, 1.442695
      %v1107 = vpow.pop %v1106
      %v1108 = vmul.f32 %v1004, 1.442695
      %v1109 = vpow.pop %v1108
      %v1110 = vmul.f32 %v1005, 1.442695
      %v1111 = vpow.pop %v1110
      %v1112 = vmul.f32 %v1006, 1.442695
      %v1113 = vpow.pop %v1112
      %v1114 = vmul.f32 %v1007, 1.442695
      %v1115 = vpow.pop %v1114
      %v1116 = vmul.f32 %v1008, 1.442695
      %v1117 = vpow.pop %v1116
      %v1118 = vmul.f32 %v1009, 1.442695
      %v1119 = vpow.pop %v1118
      %v1120 = vmul.f32 %v1010, 1.442695
      %v1121 = vpow.pop %v1120
      %v1122 = vmul.f32 %v1011, 1.442695
      %v1123 = vpow.pop %v1122
      %v1124 = vmul.f32 %v1012, 1.442695
      %v1125 = vpow.pop %v1124
      %v1126 = vmul.f32 %v1013, 1.442695
      %v1127 = vpow.pop %v1126
      %v1128 = vmul.f32 %v1014, 1.442695
      %v1129 = vpow.pop %v1128
      %v1130 = vmul.f32 %v1015, 1.442695
      %v1131 = vpow.pop %v1130
      %v1132 = vmul.f32 %v1016, 1.442695
      %v1133 = vpow.pop %v1132
      %v1134 = vmul.f32 %v1017, 1.442695
      %v1135 = vpow.pop %v1134
      %v1136 = vmul.f32 %v1018, 1.442695
      %v1137 = vpow.pop %v1136
      %v1138 = vmul.f32 %v1019, 1.442695
      %v1139 = vpow.pop %v1138
      %v1140 = vmul.f32 %v1020, 1.442695
      %v1141 = vpow.pop %v1140
      %v1142 = vmul.f32 %v1021, 1.442695
      %v1143 = vpow.pop %v1142
      %v1144 = vmul.f32 %v1022, 1.442695
      %v1145 = vpow.pop %v1144
      %v1146 = vmul.f32 %v1023, 1.442695
      %v1147 = vpow.pop %v1146
      %v1148 = vmul.f32 %v1024, 1.442695
      %v1149 = vpow.pop %v1148
      %v1150 = vmul.f32 %v1025, 1.442695
      %v1151 = vpow.pop %v1150
      %v1152 = vmul.f32 %v1026, 1.442695
      %v1153 = vpow.pop %v1152
      %v1154 = vmul.f32 %v1027, 1.442695
      %v1155 = vpow.pop %v1154
      %v1156 = vmul.f32 %v1028, 1.442695
      %v1157 = vpow.pop %v1156
      %v1158 = vmul.f32 %v1029, 1.442695
      %v1159 = vpow.pop %v1158
      %v1160 = vmul.f32 %v1030, 1.442695
      %v1161 = vpow.pop %v1160
      %v1162 = vmul.f32 %v1031, 1.442695
      %v1163 = vpow.pop %v1162
      %v1164 = vmul.f32 %v1032, 1.442695
      %v1165 = vpow.pop %v1164
      %v1166 = vmul.f32 %v1033, 1.442695
      %v1167 = vpow.pop %v1166
      %v1168 = vmul.f32 %v1034, 1.442695
      %v1169 = vpow.pop %v1168
      %v1170 = vmul.f32 %v1035, 1.442695
      %v1171 = vpow.pop %v1170
      %v1172 = vmul.f32 %v1036, 1.442695
      %v1173 = vpow.pop %v1172
      %v1174 = vmul.f32 %v1037, 1.442695
      %v1175 = vpow.pop %v1174
      %v1176 = vmul.f32 %v1038, 1.442695
      %v1177 = vpow.pop %v1176
      %v1178 = vmul.f32 %v1039, 1.442695
      %v1179 = vpow.pop %v1178
      %v1180 = vmul.f32 %v1040, 1.442695
      %v1181 = vpow.pop %v1180
      %v1182 = vmul.f32 %v1041, 1.442695
      %v1183 = vpow.pop %v1182
      %v1184 = vmul.f32 %v1042, 1.442695
      %v1185 = vpow.pop %v1184
      %v1186 = vmul.f32 %v1043, 1.442695
      %v1187 = vpow.pop %v1186
      %v1188 = vmul.f32 %v1044, 1.442695
      %v1189 = vpow.pop %v1188
      %v1190 = vmul.f32 %v1045, 1.442695
      %v1191 = vpow.pop %v1190
      %v1192 = vmul.f32 %v1046, 1.442695
      %v1193 = vpow.pop %v1192
      %v1194 = vmul.f32 %v1047, 1.442695
      %v1195 = vpow.pop %v1194
      %v1196 = vmul.f32 %v1048, 1.442695
      %v1197 = vpow.pop %v1196
      %v1198 = vmul.f32 %v1049, 1.442695
      %v1199 = vpow.pop %v1198
      %v1200 = vmul.f32 %v1050, 1.442695
      %v1201 = vpow.pop %v1200
      %v1202 = vmul.f32 %v1051, 1.442695
      %v1203 = vpow.pop %v1202
      %v1204 = vmul.f32 %v1052, 1.442695
      %v1205 = vpow.pop %v1204
      %v1206 = vmul.f32 %v1053, 1.442695
      %v1207 = vpow.pop %v1206
      %v1208 = vmul.f32 %v1054, 1.442695
      %v1209 = vpow.pop %v1208
      %v1210 = vmul.f32 %v1055, 1.442695
      %v1211 = vpow.pop %v1210
      %v1212 = vmul.f32 %v1056, 1.442695
      %v1213 = vpow.pop %v1212
      %v1214 = vmul.f32 %v1057, 1.442695
      %v1215 = vpow.pop %v1214
      %v1216 = vmul.f32 %v1058, 1.442695
      %v1217 = vpow.pop %v1216
      %v1218 = vmul.f32 %v1059, 1.442695
      %v1219 = vpow.pop %v1218
      %v1220 = vmul.f32 %v1060, 1.442695
      %v1221 = vpow.pop %v1220
      %v1222 = vmul.f32 %v1061, 1.442695
      %v1223 = vpow.pop %v1222
      %v1224 = vmul.f32 %v1062, 1.442695
      %v1225 = vpow.pop %v1224
      %v1226 = vmul.f32 %v1063, 1.442695
      %v1227 = vpow.pop %v1226
      %v1228 = vmul.f32 %v1064, 1.442695
      %v1229 = vpow.pop %v1228
      %v1230 = vmul.f32 %v1065, 1.442695
      %v1231 = vpow.pop %v1230
      %v1232 = vmul.f32 %v1066, 1.442695
      %v1233 = vpow.pop %v1232
      %v1234 = vmul.f32 %v1067, 1.442695
      %v1235 = vpow.pop %v1234
      %v1236 = vadd.f32 %v1069, %v1077
      %v1237 = vadd.f32 %v1236, %v1085
      %v1238 = vadd.f32 %v1237, %v1093
      %v1239 = vadd.f32 %v1238, %v1101
      %v1240 = vadd.f32 %v1239, %v1109
      %v1241 = vadd.f32 %v1240, %v1117
      %v1242 = vadd.f32 %v1241, %v1125
      %v1243 = vadd.f32 %v1242, %v1133
      %v1244 = vadd.f32 %v1243, %v1141
      %v1245 = vadd.f32 %v1244, %v1149
      %v1246 = vadd.f32 %v1245, %v1157
      %v1247 = vadd.f32 %v1246, %v1165
      %v1248 = vadd.f32 %v1247, %v1173
      %v1249 = vadd.f32 %v1248, %v1181
      %v1250 = vadd.f32 %v1249, %v1189
      %v1251 = vadd.f32 %v1250, %v1197
      %v1252 = vadd.f32 %v1251, %v1205
      %v1253 = vadd.f32 %v1252, %v1213
      %v1254 = vadd.f32 %v1253, %v1221
      %v1255 = vadd.f32 %v1254, %v1229
      %v1256 = vrot.slane %v1255, 4
      %v1257 = vadd.f32 %v1255, %v1256
      %v1258 = vrot.slane %v1257, 2
      %v1259 = vadd.f32 %v1257, %v1258
      %v1260 = vrot.slane %v1259, 1
      %v1261 = vadd.f32 %v1259, %v1260
      %v1262 = vadd.f32 %v1071, %v1079
      %v1263 = vadd.f32 %v1262, %v1087
      %v1264 = vadd.f32 %v1263, %v1095
      %v1265 = vadd.f32 %v1264, %v1103
      %v1266 = vadd.f32 %v1265, %v1111
      %v1267 = vadd.f32 %v1266, %v1119
      %v1268 = vadd.f32 %v1267, %v1127
      %v1269 = vadd.f32 %v1268, %v1135
      %v1270 = vadd.f32 %v1269, %v1143
      %v1271 = vadd.f32 %v1270, %v1151
      %v1272 = vadd.f32 %v1271, %v1159
      %v1273 = vadd.f32 %v1272, %v1167
      %v1274 = vadd.f32 %v1273, %v1175
      %v1275 = vadd.f32 %v1274, %v1183
      %v1276 = vadd.f32 %v1275, %v1191
      %v1277 = vadd.f32 %v1276, %v1199
      %v1278 = vadd.f32 %v1277, %v1207
      %v1279 = vadd.f32 %v1278, %v1215
      %v1280 = vadd.f32 %v1279, %v1223
      %v1281 = vadd.f32 %v1280, %v1231
      %v1282 = vrot.slane %v1281, 4
      %v1283 = vadd.f32 %v1281, %v1282
      %v1284 = vrot.slane %v1283, 2
      %v1285 = vadd.f32 %v1283, %v1284
      %v1286 = vrot.slane %v1285, 1
      %v1287 = vadd.f32 %v1285, %v1286
      %v1288 = vadd.f32 %v1073, %v1081
      %v1289 = vadd.f32 %v1288, %v1089
      %v1290 = vadd.f32 %v1289, %v1097
      %v1291 = vadd.f32 %v1290, %v1105
      %v1292 = vadd.f32 %v1291, %v1113
      %v1293 = vadd.f32 %v1292, %v1121
      %v1294 = vadd.f32 %v1293, %v1129
      %v1295 = vadd.f32 %v1294, %v1137
      %v1296 = vadd.f32 %v1295, %v1145
      %v1297 = vadd.f32 %v1296, %v1153
      %v1298 = vadd.f32 %v1297, %v1161
      %v1299 = vadd.f32 %v1298, %v1169
      %v1300 = vadd.f32 %v1299, %v1177
      %v1301 = vadd.f32 %v1300, %v1185
      %v1302 = vadd.f32 %v1301, %v1193
      %v1303 = vadd.f32 %v1302, %v1201
      %v1304 = vadd.f32 %v1303, %v1209
      %v1305 = vadd.f32 %v1304, %v1217
      %v1306 = vadd.f32 %v1305, %v1225
      %v1307 = vadd.f32 %v1306, %v1233
      %v1308 = vrot.slane %v1307, 4
      %v1309 = vadd.f32 %v1307, %v1308
      %v1310 = vrot.slane %v1309, 2
      %v1311 = vadd.f32 %v1309, %v1310
      %v1312 = vrot.slane %v1311, 1
      %v1313 = vadd.f32 %v1311, %v1312
      %v1314 = vadd.f32 %v1075, %v1083
      %v1315 = vadd.f32 %v1314, %v1091
      %v1316 = vadd.f32 %v1315, %v1099
      %v1317 = vadd.f32 %v1316, %v1107
      %v1318 = vadd.f32 %v1317, %v1115
      %v1319 = vadd.f32 %v1318, %v1123
      %v1320 = vadd.f32 %v1319, %v1131
      %v1321 = vadd.f32 %v1320, %v1139
      %v1322 = vadd.f32 %v1321, %v1147
      %v1323 = vadd.f32 %v1322, %v1155
      %v1324 = vadd.f32 %v1323, %v1163
      %v1325 = vadd.f32 %v1324, %v1171
      %v1326 = vadd.f32 %v1325, %v1179
      %v1327 = vadd.f32 %v1326, %v1187
      %v1328 = vadd.f32 %v1327, %v1195
      %v1329 = vadd.f32 %v1328, %v1203
      %v1330 = vadd.f32 %v1329, %v1211
      %v1331 = vadd.f32 %v1330, %v1219
      %v1332 = vadd.f32 %v1331, %v1227
      %v1333 = vadd.f32 %v1332, %v1235
      %v1334 = vrot.slane %v1333, 4
      %v1335 = vadd.f32 %v1333, %v1334
      %v1336 = vrot.slane %v1335, 2
      %v1337 = vadd.f32 %v1335, %v1336
      %v1338 = vrot.slane %v1337, 1
      %v1339 = vadd.f32 %v1337, %v1338
      %v1340 = vld [vmem:[%s347] sm:$0xf]
      %v1341 = vpack.c.bf16 %v1077, %v1069
      %v1342 = vpack.c.bf16 %v1079, %v1071
      %v1343 = vpack.c.bf16 %v1081, %v1073
      %v1344 = vpack.c.bf16 %v1083, %v1075
      %v1345 = vpack.c.bf16 %v1093, %v1085
      %v1346 = vpack.c.bf16 %v1095, %v1087
      %v1347 = vpack.c.bf16 %v1097, %v1089
      %v1348 = vpack.c.bf16 %v1099, %v1091
      %v1349 = vpack.c.bf16 %v1109, %v1101
      %v1350 = vpack.c.bf16 %v1111, %v1103
      %v1351 = vpack.c.bf16 %v1113, %v1105
      %v1352 = vpack.c.bf16 %v1115, %v1107
      %v1353 = vpack.c.bf16 %v1125, %v1117
      %v1354 = vpack.c.bf16 %v1127, %v1119
      %v1355 = vpack.c.bf16 %v1129, %v1121
      %v1356 = vpack.c.bf16 %v1131, %v1123
      %v1357 = vpack.c.bf16 %v1141, %v1133
      %v1358 = vpack.c.bf16 %v1143, %v1135
      %v1359 = vpack.c.bf16 %v1145, %v1137
      %v1360 = vpack.c.bf16 %v1147, %v1139
      %v1361 = vpack.c.bf16 %v1157, %v1149
      %v1362 = vpack.c.bf16 %v1159, %v1151
      %v1363 = vpack.c.bf16 %v1161, %v1153
      %v1364 = vpack.c.bf16 %v1163, %v1155
      %v1365 = vpack.c.bf16 %v1173, %v1165
      %v1366 = vpack.c.bf16 %v1175, %v1167
      %v1367 = vpack.c.bf16 %v1177, %v1169
      %v1368 = vpack.c.bf16 %v1179, %v1171
      %v1369 = vpack.c.bf16 %v1189, %v1181
      %v1370 = vpack.c.bf16 %v1191, %v1183
      %v1371 = vpack.c.bf16 %v1193, %v1185
      %v1372 = vpack.c.bf16 %v1195, %v1187
      %v1373 = vpack.c.bf16 %v1205, %v1197
      %v1374 = vpack.c.bf16 %v1207, %v1199
      %v1375 = vpack.c.bf16 %v1209, %v1201
      %v1376 = vpack.c.bf16 %v1211, %v1203
      %v1377 = vpack.c.bf16 %v1221, %v1213
      %v1378 = vpack.c.bf16 %v1223, %v1215
      %v1379 = vpack.c.bf16 %v1225, %v1217
      %v1380 = vpack.c.bf16 %v1227, %v1219
      %v1381 = vpack.c.bf16 %v1229, %v1229
      %v1382 = vpack.c.bf16 %v1231, %v1231
      %v1383 = vpack.c.bf16 %v1233, %v1233
      %v1384 = vpack.c.bf16 %v1235, %v1235
      %v1387 = vunpack.c.l.s4 1983009808
      %v1388 = vunpack.c.0.s8 %v1387
      %v1389 = vlaneseq
      %v1390 = vshrl.u32 %v1389, 7
      %v1391 = vsub.s32 %v1388, %v1390
      %v1392 = vrot.slane %v1340, %v1391
      %v1393 = vcombine.high %v1392, %v1392
      %vm1395 = vcmask 326656
      %v1397 = vsel %vm1395, %v1393, 0
      %v1400 = vsel %vm378, %v1381, 0
      %v1403 = vsel %vm378, %v1382, 0
      %v1406 = vsel %vm378, %v1383, 0
      %v1409 = vsel %vm378, %v1384, 0
      %1411 = vmatprep.subr.bf16.mxu0 %v1370
      %1412 = vmatpush1.bf16.msra.mxu0 %v1369
      %1413 = vmatprep.subr.bf16.mxu0 %v1366
      %1414 = vmatpush1.bf16.msra.mxu0 %v1365
      %1415 = vmatprep.subr.bf16.mxu0 %v1362
      %1416 = vmatpush1.bf16.msra.mxu0 %v1361
      %1417 = vmatprep.subr.bf16.mxu0 %v1358
      %1418 = vmatpush1.bf16.msra.mxu0 %v1357
      %1419 = vmatprep.subr.bf16.mxu0 %v1354
      %1420 = vmatpush1.bf16.msra.mxu0 %v1353
      %1421 = vmatprep.subr.bf16.mxu0 %v1350
      %1422 = vmatpush1.bf16.msra.mxu0 %v1349
      %1423 = vmatprep.subr.bf16.mxu0 %v1346
      %1424 = vmatpush1.bf16.msra.mxu0 %v1345
      %1425 = vmatprep.subr.bf16.mxu0 %v1342
      %1426 = vmatpush1.bf16.msra.mxu0 %v1341
      %1427 = vmatprep.subr.bf16.mxu0 0
      %1428 = vmatpush2.bf16.msra.mxu0 0
      %1429 = vmatprep.subr.bf16.mxu0 0
      %1430 = vmatpush2.bf16.msra.mxu0 0
      %1431 = vmatprep.subr.bf16.mxu0 0
      %1432 = vmatpush2.bf16.msra.mxu0 0
      %1433 = vmatprep.subr.bf16.mxu0 0
      %1434 = vmatpush2.bf16.msra.mxu0 0
      %1435 = vmatprep.subr.bf16.mxu0 0
      %1436 = vmatpush2.bf16.msra.mxu0 0
      %1437 = vmatprep.subr.bf16.mxu0 %v1403
      %1438 = vmatpush2.bf16.msra.mxu0 %v1400
      %1439 = vmatprep.subr.bf16.mxu0 %v1378
      %1440 = vmatpush2.bf16.msra.mxu0 %v1377
      %1441 = vmatprep.subr.bf16.mxu0 %v1374
      %1442 = vmatpush2.bf16.msra.mxu0 %v1373
      %1443 = vmatprep.mubr.bf16.mxu0 %v1397
      %1444 = vmatmul.mubr.bf16.gmra.mxu0 %v1392
      %v1445 = vpop.f32.mrf.mxu0
      %v1446 = vadd.f32 0.0, %v1445
      %v1447 = vpop.f32.mrf.mxu0
      %v1448 = vadd.f32 0.0, %v1447
      %v1449 = vpop.f32.mrf.mxu0
      %v1450 = vpop.f32.mrf.mxu0
      %1451 = vdwg.mxu0
      %1452 = vmatprep.subr.bf16.mxu0 %v1372
      %1453 = vmatpush1.bf16.msra.mxu0 %v1371
      %1454 = vmatprep.subr.bf16.mxu0 %v1368
      %1455 = vmatpush1.bf16.msra.mxu0 %v1367
      %1456 = vmatprep.subr.bf16.mxu0 %v1364
      %1457 = vmatpush1.bf16.msra.mxu0 %v1363
      %1458 = vmatprep.subr.bf16.mxu0 %v1360
      %1459 = vmatpush1.bf16.msra.mxu0 %v1359
      %1460 = vmatprep.subr.bf16.mxu0 %v1356
      %1461 = vmatpush1.bf16.msra.mxu0 %v1355
      %1462 = vmatprep.subr.bf16.mxu0 %v1352
      %1463 = vmatpush1.bf16.msra.mxu0 %v1351
      %1464 = vmatprep.subr.bf16.mxu0 %v1348
      %1465 = vmatpush1.bf16.msra.mxu0 %v1347
      %1466 = vmatprep.subr.bf16.mxu0 %v1344
      %1467 = vmatpush1.bf16.msra.mxu0 %v1343
      %1468 = vmatprep.subr.bf16.mxu0 0
      %1469 = vmatpush2.bf16.msra.mxu0 0
      %1470 = vmatprep.subr.bf16.mxu0 0
      %1471 = vmatpush2.bf16.msra.mxu0 0
      %1472 = vmatprep.subr.bf16.mxu0 0
      %1473 = vmatpush2.bf16.msra.mxu0 0
      %1474 = vmatprep.subr.bf16.mxu0 0
      %1475 = vmatpush2.bf16.msra.mxu0 0
      %1476 = vmatprep.subr.bf16.mxu0 0
      %1477 = vmatpush2.bf16.msra.mxu0 0
      %1478 = vmatprep.subr.bf16.mxu0 %v1409
      %1479 = vmatpush2.bf16.msra.mxu0 %v1406
      %1480 = vmatprep.subr.bf16.mxu0 %v1380
      %1481 = vmatpush2.bf16.msra.mxu0 %v1379
      %1482 = vmatprep.subr.bf16.mxu0 %v1376
      %1483 = vmatpush2.bf16.msra.mxu0 %v1375
      %1484 = vmatprep.mubr.bf16.mxu0 %v1397
      %1485 = vmatmul.mubr.bf16.gmra.mxu0 %v1392
      %v1486 = vpop.f32.mrf.mxu0
      %v1487 = vadd.f32 0.0, %v1486
      %v1488 = vpop.f32.mrf.mxu0
      %v1489 = vadd.f32 0.0, %v1488
      %v1490 = vpop.f32.mrf.mxu0
      %v1491 = vpop.f32.mrf.mxu0
      %1492 = vdwg.mxu0
      %v1493 = vrcp.pop %v1261
      %v1494 = vrcp.pop %v1287
      %v1495 = vrcp.pop %v1313
      %v1496 = vrcp.pop %v1339
      %v1497 = vmul.f32 %v1446, %v1493
      %v1498 = vmul.f32 %v1448, %v1494
      %v1499 = vmul.f32 %v1487, %v1495
      %v1500 = vmul.f32 %v1489, %v1496
      %v1501 = vld [vmem:[%s5] sm:$0xf]
      %v1502 = vpack.c.bf16 %v1497, %v1497
      %v1503 = vpack.c.bf16 %v1498, %v1498
      %v1504 = vpack.c.bf16 %v1499, %v1499
      %v1505 = vpack.c.bf16 %v1500, %v1500
      %v1506 = vld [vmem:[%s6] sm:$0xff]
      %1508 = vset.pattern.permute.xlu0 0
      %1509 = vperm.xlu0 %1508, %v1506
      %v1510 = vpop.permute.xlu0 %1509
      %v1513 = vsel %vm551, %v1501, 0
      %v1516 = vsel %vm585, %v1502, 0
      %v1519 = vsel %vm585, %v1503, 0
      %v1522 = vsel %vm585, %v1504, 0
      %v1525 = vsel %vm585, %v1505, 0
      %1527 = vmatprep.subr.bf16.mxu0 0
      %1528 = vmatpush1.bf16.msra.mxu0 0
      %1529 = vmatprep.subr.bf16.mxu0 0
      %1530 = vmatpush1.bf16.msra.mxu0 0
      %1531 = vmatprep.subr.bf16.mxu0 0
      %1532 = vmatpush1.bf16.msra.mxu0 0
      %1533 = vmatprep.subr.bf16.mxu0 0
      %1534 = vmatpush1.bf16.msra.mxu0 0
      %1535 = vmatprep.subr.bf16.mxu0 0
      %1536 = vmatpush1.bf16.msra.mxu0 0
      %1537 = vmatprep.subr.bf16.mxu0 0
      %1538 = vmatpush1.bf16.msra.mxu0 0
      %1539 = vmatprep.subr.bf16.mxu0 0
      %1540 = vmatpush1.bf16.msra.mxu0 0
      %1541 = vmatprep.subr.bf16.mxu0 %v1519
      %1542 = vmatpush1.bf16.msra.mxu0 %v1516
      %1543 = vmatprep.subr.bf16.mxu0 0
      %1544 = vmatpush2.bf16.msra.mxu0 0
      %1545 = vmatprep.subr.bf16.mxu0 0
      %1546 = vmatpush2.bf16.msra.mxu0 0
      %1547 = vmatprep.subr.bf16.mxu0 0
      %1548 = vmatpush2.bf16.msra.mxu0 0
      %1549 = vmatprep.subr.bf16.mxu0 0
      %1550 = vmatpush2.bf16.msra.mxu0 0
      %1551 = vmatprep.subr.bf16.mxu0 0
      %1552 = vmatpush2.bf16.msra.mxu0 0
      %1553 = vmatprep.subr.bf16.mxu0 0
      %1554 = vmatpush2.bf16.msra.mxu0 0
      %1555 = vmatprep.subr.bf16.mxu0 0
      %1556 = vmatpush2.bf16.msra.mxu0 0
      %1557 = vmatprep.subr.bf16.mxu0 0
      %1558 = vmatpush2.bf16.msra.mxu0 0
      %1559 = vmatprep.mubr.bf16.mxu0 0
      %1560 = vmatmul.mubr.bf16.gmra.mxu0 %v1513
      %v1561 = vpop.f32.mrf.mxu0
      %v1562 = vadd.f32 %v1510, %v1561
      %v1563 = vpop.f32.mrf.mxu0
      %v1564 = vadd.f32 %v1510, %v1563
      %v1565 = vpop.f32.mrf.mxu0
      %v1566 = vpop.f32.mrf.mxu0
      %1567 = vdwg.mxu0
      %1568 = vmatprep.subr.bf16.mxu0 0
      %1569 = vmatpush1.bf16.msra.mxu0 0
      %1570 = vmatprep.subr.bf16.mxu0 0
      %1571 = vmatpush1.bf16.msra.mxu0 0
      %1572 = vmatprep.subr.bf16.mxu0 0
      %1573 = vmatpush1.bf16.msra.mxu0 0
      %1574 = vmatprep.subr.bf16.mxu0 0
      %1575 = vmatpush1.bf16.msra.mxu0 0
      %1576 = vmatprep.subr.bf16.mxu0 0
      %1577 = vmatpush1.bf16.msra.mxu0 0
      %1578 = vmatprep.subr.bf16.mxu0 0
      %1579 = vmatpush1.bf16.msra.mxu0 0
      %1580 = vmatprep.subr.bf16.mxu0 0
      %1581 = vmatpush1.bf16.msra.mxu0 0
      %1582 = vmatprep.subr.bf16.mxu0 %v1525
      %1583 = vmatpush1.bf16.msra.mxu0 %v1522
      %1584 = vmatprep.subr.bf16.mxu0 0
      %1585 = vmatpush2.bf16.msra.mxu0 0
      %1586 = vmatprep.subr.bf16.mxu0 0
      %1587 = vmatpush2.bf16.msra.mxu0 0
      %1588 = vmatprep.subr.bf16.mxu0 0
      %1589 = vmatpush2.bf16.msra.mxu0 0
      %1590 = vmatprep.subr.bf16.mxu0 0
      %1591 = vmatpush2.bf16.msra.mxu0 0
      %1592 = vmatprep.subr.bf16.mxu0 0
      %1593 = vmatpush2.bf16.msra.mxu0 0
      %1594 = vmatprep.subr.bf16.mxu0 0
      %1595 = vmatpush2.bf16.msra.mxu0 0
      %1596 = vmatprep.subr.bf16.mxu0 0
      %1597 = vmatpush2.bf16.msra.mxu0 0
      %1598 = vmatprep.subr.bf16.mxu0 0
      %1599 = vmatpush2.bf16.msra.mxu0 0
      %1600 = vmatprep.mubr.bf16.mxu0 0
      %1601 = vmatmul.mubr.bf16.gmra.mxu0 %v1513
      %v1602 = vpop.f32.mrf.mxu0
      %v1603 = vadd.f32 %v1510, %v1602
      %v1604 = vpop.f32.mrf.mxu0
      %v1605 = vadd.f32 %v1510, %v1604
      %v1606 = vpop.f32.mrf.mxu0
      %v1607 = vpop.f32.mrf.mxu0
      %1608 = vdwg.mxu0
      %v1609 = vadd.f32 %v1562, %v359
      %v1610 = vadd.f32 %v1564, %v360
      %v1611 = vadd.f32 %v1603, %v361
      %v1612 = vadd.f32 %v1605, %v362
      %1613 = vst [vmem:[%s356] sm:$0xff] %v1609
      %1614 = vst [vmem:[%s356 + $0x8] sm:$0xff] %v1610
      %1615 = vst [vmem:[%s356 + $0x10] sm:$0xff] %v1611
      %1616 = vst [vmem:[%s356 + $0x18] sm:$0xff] %v1612
      %s1617 = smul.u32 4, %s23
      %p1618 = scmp.lt.s32.totalorder %s22, 1
      %s1619 = scalar_select %p1618, %s22, 1
      %p1620 = scmp.lt.s32.totalorder %s1617, 7
      %s1621 = scalar_select %p1620, %s1617, 7
      %s1622 = smul.addr %s1619, 8
      %s1623 = sadd.s32 %s1621, %s1622
      %s1624 = smul.addr %s1623, 8
      %s1625 = scalar_lea.vmem %s7, %s1624
      // Predicated region
      $region49: #{_lambda_.1} parent=47 // pred_check
        %p1626 = pneg %p214
      $region50: #{_lambda_.1} parent=47 // pred_check_branch
        %1628 = sbr.rel (%p1626) target = $region52
      $region51: #{_lambda_.1} parent=47 // pred_region
        %s1629 = smul.u32 4, %s23
      $region52: #{_lambda_.1} parent=47 // pred_fallthru
        _
    $region48: #{_lambda_.1} parent=5 // pred_fallthru
      _
    %p1630 = scmp.le.s32.totalorder 2, %s13
    // Predicated region
    $region53: #{_lambda_.1} parent=5 // pred_check
      %p1631 = pneg %p1630
    $region54: #{_lambda_.1} parent=5 // pred_check_branch
      %1633 = sbr.rel (%p1631) target = $region56
    $region55: #{_lambda_.1} parent=5 // pred_region
      %s1634 = ssub.s32 %s13, 2
      // Predicated region
      $region57: #{_lambda_.1} parent=55 // pred_check
        %p1635 = pneg %p220
      $region58: #{_lambda_.1} parent=55 // pred_check_branch
        %1637 = sbr.rel (%p1635) target = $region60
      $region59: #{_lambda_.1} parent=55 // pred_region
        %s1638 = smul.u32 4, %s25
        %p1639 = scmp.lt.s32.totalorder %s24, 1
        %s1640 = scalar_select %p1639, %s24, 1
        %p1641 = scmp.lt.s32.totalorder %s1638, 7
        %s1642 = scalar_select %p1641, %s1638, 7
        %s1643 = smul.addr %s1640, 8
        %s1644 = sadd.s32 %s1642, %s1643
        %s1645 = smul.addr %s1644, 8
        %s1646 = scalar_lea.vmem %s7, %s1645
      $region60: #{_lambda_.1} parent=55 // pred_fallthru
        _
    $region56: #{_lambda_.1} parent=5 // pred_fallthru
      _
  $region6: #{_lambda_.1} parent=0 // loop_footer
    %s17 = sadd.s32 1, %s13
  $region7: #{_lambda_.1} parent=0 // loop_footer_branch
    %12 = sbr.rel target = $region3
  $region8: #{_lambda_.1} parent=0 // loop_exit
    _

</llo_original>
